<compile_context>
chip_gen: v7x
topology: tpu7x:2x2x1
jax: 0.10.0
libtpu: 0.0.40
codegen_flags: <defaults>
</compile_context>

<pallas_src>
import functools

import numpy as np
import jax
import jax.numpy as jnp
from jax.experimental import pallas as pl
from jax.experimental.pallas import tpu as pltpu

EPS = 1e-5          # BatchNorm2d default eps
KH = KW = 7
STRIDE = 2
PAD = 3


# ----------------------------- Pallas kernels -------------------------------

def _conv_stats_kernel(af_ref, ar_ref, w_ref, co_ref, st_ref):
    """conv1 (im2col matmul) for fake & real + per-tile BN batch stats."""
    w = w_ref[...]                                                       # (K, 64) bf16
    cf = jnp.dot(af_ref[...], w, preferred_element_type=jnp.float32)    # (TM, 64) f32
    cr = jnp.dot(ar_ref[...], w, preferred_element_type=jnp.float32)    # (TM, 64) f32
    c = jnp.concatenate([cf, cr], axis=1)                               # (TM, 128) f32
    co_ref[...] = c.astype(co_ref.dtype)                                # lane-dense bf16 store
    # per-lane sum / sum-of-squares from the f32 accumulation
    # (explicitly zero-padded tail rows contribute exactly zero).
    s = jnp.sum(c, axis=0, keepdims=True)                               # (1, 128)
    s2 = jnp.sum(c * c, axis=0, keepdims=True)                          # (1, 128)
    # TODO(synk): E[x^2]-E[x]^2 can cancel for channels with |mean| >> std; a
    # centered second accumulation would be safer for pathological inputs.
    st_ref[...] = jnp.concatenate([s, s2], axis=0)[None]                # (1, 2, 128)


def conv_and_stats(pf, pr, w, tm):
    mpad, k = pf.shape
    cout = w.shape[1]
    nc = 2 * cout
    t = mpad // tm
    return pl.pallas_call(
        _conv_stats_kernel,
        out_shape=(jax.ShapeDtypeStruct((mpad, nc), jnp.bfloat16),
                   jax.ShapeDtypeStruct((t, 2, nc), jnp.float32)),
        grid=(t,),
        in_specs=[pl.BlockSpec((tm, k), lambda i: (i, 0)),
                  pl.BlockSpec((tm, k), lambda i: (i, 0)),
                  pl.BlockSpec((k, cout), lambda i: (0, 0))],
        out_specs=(pl.BlockSpec((tm, nc), lambda i: (i, 0)),
                   pl.BlockSpec((1, 2, nc), lambda i: (i, 0, 0))),
        compiler_params=pltpu.CompilerParams(
            dimension_semantics=("parallel",)),          # both TCs on v7x
    )(pf, pr, w)


def _bn_relu_mse_kernel(co_ref, m_ref, ss_ref, out_ref, *, half_lanes):
    x = co_ref[...].astype(jnp.float32)                                  # (TP, 128)
    y = jnp.maximum(x * ss_ref[0:1, :] + ss_ref[1:2, :], 0.0)            # BN + ReLU
    # lanes 0:64 hold fake channels, 64:128 hold real channels ->
    # lane roll by 64 (XLU slot) gives [yr | yf]; diff is [yf-yr | yr-yf].
    d = y - pltpu.roll(y, shift=half_lanes, axis=1)
    # masked per-lane accumulation as a lane-dense mat-vec on the MXU;
    # zero-padded tail rows have mask 0 and contribute nothing.
    s = jnp.dot(m_ref[...], d * d, preferred_element_type=jnp.float32)   # (1, 128)
    out_ref[...] = s[None]                                               # (1, 1, 128)


def bn_relu_mse(conv_out, imask, ss, tp, cout):
    mpad, nc = conv_out.shape
    t = mpad // tp
    kernel = functools.partial(_bn_relu_mse_kernel, half_lanes=cout)
    return pl.pallas_call(
        kernel,
        out_shape=jax.ShapeDtypeStruct((t, 1, nc), jnp.float32),
        grid=(t,),
        in_specs=[pl.BlockSpec((tp, nc), lambda i: (i, 0)),
                  pl.BlockSpec((1, tp), lambda i: (0, i)),
                  pl.BlockSpec((2, nc), lambda i: (0, 0))],
        out_specs=pl.BlockSpec((1, 1, nc), lambda i: (i, 0, 0)),
        compiler_params=pltpu.CompilerParams(
            dimension_semantics=("parallel",)),          # both TCs on v7x
    )(conv_out, imask, ss)


# --------------------------------- glue --------------------------------------

def _im2col(x):
    # TODO(synk): the 49x im2col expansion is still materialized in HBM by XLA;
    # removing that round trip needs an in-kernel 49-tap gather from padded
    # NHWC (memory_space=pl.ANY) or allow_input_fusion.
    N, C, H, W = x.shape
    Ho = (H + 2 * PAD - KH) // STRIDE + 1
    Wo = (W + 2 * PAD - KW) // STRIDE + 1
    xp = jnp.pad(x, ((0, 0), (0, 0), (PAD, PAD), (PAD, PAD)))
    cols = []
    for dh in range(KH):
        for dw in range(KW):
            cols.append(xp[:, :, dh:dh + STRIDE * Ho:STRIDE, dw:dw + STRIDE * Wo:STRIDE])
    p = jnp.stack(cols, axis=-1)            # (N, C, Ho, Wo, KH*KW)
    p = p.transpose(0, 2, 3, 1, 4)          # (N, Ho, Wo, C, KH*KW)
    return p.reshape(N * Ho * Wo, C * KH * KW), Ho, Wo


def _bilinear_matrix(out_size, in_size):
    # 1-D interpolation matrix matching F.interpolate(mode='bilinear',
    # align_corners=False) along one spatial axis.
    scale = in_size / out_size
    i = np.arange(out_size, dtype=np.float64)
    src = np.maximum((i + 0.5) * scale - 0.5, 0.0)
    x0 = np.minimum(np.floor(src).astype(np.int64), in_size - 1)
    x1 = np.minimum(x0 + 1, in_size - 1)
    w1 = (src - x0).astype(np.float32)
    w0 = 1.0 - w1
    m = np.zeros((out_size, in_size), dtype=np.float32)
    m[np.arange(out_size), x0] += w0
    m[np.arange(out_size), x1] += w1
    return jnp.asarray(m)


def perceptual_loss(fake, real, mask, conv_w, gamma, beta):
    # Only conv1 -> bn1 -> relu contributes to the loss (c == 1), see header.
    N, Cin, H, W = fake.shape
    Cout = conv_w.shape[0]                  # 64 for the ResNet50 stem -> NC = 128
    K = Cin * KH * KW
    pf, Ho, Wo = _im2col(fake)
    pr, _, _ = _im2col(real)
    M = N * Ho * Wo
    P = Ho * Wo

    pf = pf.astype(jnp.bfloat16)            # (M, K) bf16, fake patches
    pr = pr.astype(jnp.bfloat16)            # (M, K) bf16, real patches
    w2d = conv_w.reshape(Cout, K).T.astype(jnp.bfloat16)            # (K, Cout)

    # conv row tile: >= 512 always, 1024 for large M (VMEM-safe on all gens)
    TM = 512 if M <= 8192 else 1024
    Mpad = ((M + TM - 1) // TM) * TM
    if Mpad != M:
        pf = jnp.pad(pf, ((0, Mpad - M), (0, 0)))
        pr = jnp.pad(pr, ((0, Mpad - M), (0, 0)))
    T = Mpad // TM

    # fused conv1 (fake & real in one lane-dense 128-wide tile) + BN batch stats
    conv_out, part_stats = conv_and_stats(pf, pr, w2d, TM)      # (Mpad,128) bf16, (T,2,128)

    # finalize BN(train-stats) scale/shift in the wrapper (tiny 2x128 math)
    stats = jnp.sum(part_stats, axis=0)                         # (2, 128)
    mean = stats[0] / M
    var = jnp.maximum(stats[1] / M - mean * mean, 0.0)
    inv_std = jax.lax.rsqrt(var + EPS)
    gamma2 = jnp.concatenate([gamma, gamma]).astype(jnp.float32)
    beta2 = jnp.concatenate([beta, beta]).astype(jnp.float32)
    scale = gamma2 * inv_std                                    # gamma / std
    shift = beta2 - mean * scale                                # beta - mean*gamma/std
    ss = jnp.stack([scale, shift], axis=0)                      # (2, 128)

    # bilinear mask resize as two small interpolation matmuls (glue), flattened
    # to the row-major (n, ho, wo) order of the im2col rows.
    rh = _bilinear_matrix(Ho, mask.shape[2])
    rw = _bilinear_matrix(Wo, mask.shape[3])
    imask = jnp.einsum('hH,nHW,wW->nhw', rh, mask[:, 0], rw).reshape(1, M)
    if Mpad != M:
        imask = jnp.pad(imask, ((0, 0), (0, Mpad - M)))         # (1, Mpad)

    # loss row tile: decoupled from TM, grown up to 4096 rows when it divides Mpad
    TP = TM
    for kmul in (8, 4, 2):
        if T % kmul == 0 and TM * kmul <= 4096:
            TP = TM * kmul
            break

    lane_part = bn_relu_mse(conv_out, imask, ss, TP, Cout)      # (T2, 1, 128)
    lane_sums = jnp.sum(lane_part, axis=(0, 1))                 # (128,)
    # the 128 fused lanes double-count (yf-yr)^2 and (yr-yf)^2 -> /2, then the
    # reference mean over (C=Cout, Ho, Wo) -> /(Cout*P); batch is summed.
    return jnp.sum(lane_sums) / (2.0 * Cout * P)


# ------------------------------ reference ------------------------------------

def reference_loss(fake, real, mask, conv_w, gamma, beta):
    def stem(x):
        y = jax.lax.conv_general_dilated(
            x, conv_w, (STRIDE, STRIDE), ((PAD, PAD), (PAD, PAD)),
            dimension_numbers=('NCHW', 'OIHW', 'NCHW'),
            precision=jax.lax.Precision.HIGHEST)
        mu = jnp.mean(y, axis=(0, 2, 3), keepdims=True)
        var = jnp.mean((y - mu) ** 2, axis=(0, 2, 3), keepdims=True)
        y = (y - mu) / jnp.sqrt(var + EPS) * gamma[None, :, None, None] \
            + beta[None, :, None, None]
        return jnp.maximum(y, 0.0)

    yf, yr = stem(fake), stem(real)
    sq = (yf - yr) ** 2
    Ho, Wo = sq.shape[-2:]
    rh = _bilinear_matrix(Ho, mask.shape[2])
    rw = _bilinear_matrix(Wo, mask.shape[3])
    imask = jnp.einsum('hH,nHW,wW->nhw', rh, mask[:, 0], rw)[:, None]
    loss = jnp.mean(sq * imask, axis=(1, 2, 3))
    return (loss / 1.0).sum()


# --------------------------------- main ---------------------------------------

if __name__ == "__main__":
    key = jax.random.PRNGKey(0)
    k1, k2, k3, k4, k5, k6 = jax.random.split(key, 6)
    N, Cin, H, W = 2, 3, 32, 32                      # ResNet stem expects 3 channels
    fake = jax.random.normal(k1, (N, Cin, H, W), jnp.float32)
    real = jax.random.normal(k2, (N, Cin, H, W), jnp.float32)
    mask = jax.nn.sigmoid(jax.random.normal(k3, (N, 1, H, W), jnp.float32))
    # deterministic synthetic parameters (ResNet50 conv1 / bn1 shapes)
    conv_w = 0.05 * jax.random.normal(k4, (64, Cin, 7, 7), jnp.float32)
    gamma = 1.0 + 0.1 * jax.random.normal(k5, (64,), jnp.float32)
    beta = 0.1 * jax.random.normal(k6, (64,), jnp.float32)

    out = jax.jit(perceptual_loss)(fake, real, mask, conv_w, gamma, beta)
    out = jax.block_until_ready(out)

    ref = reference_loss(fake, real, mask, conv_w, gamma, beta)
    # tolerance loosened vs pure f32: the conv matmul runs with bf16 inputs and
    # the intermediate conv_out is stored as bf16 (f32 accumulation throughout).
    assert np.allclose(np.asarray(out), np.asarray(ref), rtol=3e-2, atol=1e-2), (out, ref)
    print("KERNEL_OK")
</pallas_src>

<mosaic_0001>
module attributes {stable_mosaic.version = 11 : i64} {
  func.func @_conv_stats_kernel(%arg0: i32, %arg1: memref<512x147xbf16, #tpu.memory_space<vmem>>, %arg2: memref<512x147xbf16, #tpu.memory_space<vmem>>, %arg3: memref<147x64xbf16, #tpu.memory_space<vmem>>, %arg4: memref<512x128xbf16, #tpu.memory_space<vmem>>, %arg5: memref<1x2x128xf32, #tpu.memory_space<vmem>>) attributes {dimension_semantics = [#tpu.dimension_semantics<parallel>], iteration_bounds = array<i64: 1>, scalar_prefetch = 0 : i64, scratch_operands = 0 : i64, tpu.core_type = #tpu.core_type<tc>, window_params = [{transform_indices = @transform_0, window_bounds = array<i64: 512, 147>}, {transform_indices = @transform_1, window_bounds = array<i64: 512, 147>}, {pipeline_mode = #tpu.pipeline_mode<synchronous>, transform_indices = @transform_2, window_bounds = array<i64: 147, 64>}, {transform_indices = @transform_3, window_bounds = array<i64: 512, 128>}, {transform_indices = @transform_4, window_bounds = array<i64: 1, 2, 128>}]} {
    %c0 = arith.constant 0 : index
    %c0_0 = arith.constant 0 : index
    %0 = vector.load %arg3[%c0, %c0_0] : memref<147x64xbf16, #tpu.memory_space<vmem>>, vector<147x64xbf16>
    %c0_1 = arith.constant 0 : index
    %c0_2 = arith.constant 0 : index
    %1 = vector.load %arg1[%c0_1, %c0_2] : memref<512x147xbf16, #tpu.memory_space<vmem>>, vector<512x147xbf16>
    %cst = arith.constant dense<0.000000e+00> : vector<512x64xf32>
    %2 = tpu.matmul %1, %0, %cst {dimension_numbers = #tpu.dot_dimension_numbers<[1], [0], [0], [1], [0, 0, 1, 1], [], []>} : vector<512x147xbf16>, vector<147x64xbf16>, vector<512x64xf32> -> vector<512x64xf32>
    %c0_3 = arith.constant 0 : index
    %c0_4 = arith.constant 0 : index
    %3 = vector.load %arg2[%c0_3, %c0_4] : memref<512x147xbf16, #tpu.memory_space<vmem>>, vector<512x147xbf16>
    %cst_5 = arith.constant dense<0.000000e+00> : vector<512x64xf32>
    %4 = tpu.matmul %3, %0, %cst_5 {dimension_numbers = #tpu.dot_dimension_numbers<[1], [0], [0], [1], [0, 0, 1, 1], [], []>} : vector<512x147xbf16>, vector<147x64xbf16>, vector<512x64xf32> -> vector<512x64xf32>
    %5 = tpu.concatenate %2, %4 in 1 : vector<512x64xf32>, vector<512x64xf32> -> vector<512x128xf32>
    %6 = arith.truncf %5 : vector<512x128xf32> to vector<512x128xbf16>
    %c0_6 = arith.constant 0 : index
    %c0_7 = arith.constant 0 : index
    %7 = vector.load %arg4[%c0_6, %c0_7] : memref<512x128xbf16, #tpu.memory_space<vmem>>, vector<512x128xbf16>
    tpu.vector_store %arg4[%c0_6, %c0_7], %6 {strides = array<i32>} : memref<512x128xbf16, #tpu.memory_space<vmem>>, vector<512x128xbf16>,
    %cst_8 = arith.constant dense<0.000000e+00> : vector<128xf32>
    %8 = vector.multi_reduction <add>, %5, %cst_8 [0] : vector<512x128xf32> to vector<128xf32>
    %9 = vector.shape_cast %8 : vector<128xf32> to vector<1x128xf32>
    %10 = arith.mulf %5, %5 : vector<512x128xf32>
    %cst_9 = arith.constant dense<0.000000e+00> : vector<128xf32>
    %11 = vector.multi_reduction <add>, %10, %cst_9 [0] : vector<512x128xf32> to vector<128xf32>
    %12 = vector.shape_cast %11 : vector<128xf32> to vector<1x128xf32>
    %13 = tpu.concatenate %9, %12 in 0 : vector<1x128xf32>, vector<1x128xf32> -> vector<2x128xf32>
    %14 = vector.shape_cast %13 : vector<2x128xf32> to vector<1x2x128xf32>
    %c0_10 = arith.constant 0 : index
    %c0_11 = arith.constant 0 : index
    %c0_12 = arith.constant 0 : index
    %15 = vector.load %arg5[%c0_10, %c0_11, %c0_12] : memref<1x2x128xf32, #tpu.memory_space<vmem>>, vector<1x2x128xf32>
    tpu.vector_store %arg5[%c0_10, %c0_11, %c0_12], %14 {strides = array<i32>} : memref<1x2x128xf32, #tpu.memory_space<vmem>>, vector<1x2x128xf32>,
    return
  }
  func.func @transform_0(%arg0: i32) -> (i32, i32) {
    %c0_i32 = arith.constant 0 : i32
    %c0_i32_0 = arith.constant 0 : i32
    return %arg0, %c0_i32 : i32, i32
  }
  func.func @transform_1(%arg0: i32) -> (i32, i32) {
    %c0_i32 = arith.constant 0 : i32
    %c0_i32_0 = arith.constant 0 : i32
    return %arg0, %c0_i32 : i32, i32
  }
  func.func @transform_2(%arg0: i32) -> (i32, i32) {
    %c0_i32 = arith.constant 0 : i32
    %c0_i32_0 = arith.constant 0 : i32
    %c0_i32_1 = arith.constant 0 : i32
    return %c0_i32, %c0_i32_0 : i32, i32
  }
  func.func @transform_3(%arg0: i32) -> (i32, i32) {
    %c0_i32 = arith.constant 0 : i32
    %c0_i32_0 = arith.constant 0 : i32
    return %arg0, %c0_i32 : i32, i32
  }
  func.func @transform_4(%arg0: i32) -> (i32, i32, i32) {
    %c0_i32 = arith.constant 0 : i32
    %c0_i32_0 = arith.constant 0 : i32
    %c0_i32_1 = arith.constant 0 : i32
    return %arg0, %c0_i32, %c0_i32_0 : i32, i32, i32
  }
}

module attributes {stable_mosaic.version = 11 : i64} {
  func.func @_bn_relu_mse_kernel(%arg0: i32, %arg1: memref<512x128xbf16, #tpu.memory_space<vmem>>, %arg2: memref<1x512xf32, #tpu.memory_space<vmem>>, %arg3: memref<2x128xf32, #tpu.memory_space<vmem>>, %arg4: memref<1x1x128xf32, #tpu.memory_space<vmem>>) attributes {dimension_semantics = [#tpu.dimension_semantics<parallel>], iteration_bounds = array<i64: 1>, scalar_prefetch = 0 : i64, scratch_operands = 0 : i64, tpu.core_type = #tpu.core_type<tc>, window_params = [{transform_indices = @transform_0, window_bounds = array<i64: 512, 128>}, {transform_indices = @transform_1, window_bounds = array<i64: 1, 512>}, {pipeline_mode = #tpu.pipeline_mode<synchronous>, transform_indices = @transform_2, window_bounds = array<i64: 2, 128>}, {transform_indices = @transform_3, window_bounds = array<i64: 1, 1, 128>}]} {
    %c0 = arith.constant 0 : index
    %c0_0 = arith.constant 0 : index
    %0 = vector.load %arg1[%c0, %c0_0] : memref<512x128xbf16, #tpu.memory_space<vmem>>, vector<512x128xbf16>
    %1 = arith.extf %0 : vector<512x128xbf16> to vector<512x128xf32>
    %c0_1 = arith.constant 0 : index
    %c0_2 = arith.constant 0 : index
    %2 = vector.load %arg3[%c0_1, %c0_2] : memref<2x128xf32, #tpu.memory_space<vmem>>, vector<1x128xf32>
    %3 = vector.broadcast %2 : vector<1x128xf32> to vector<512x128xf32>
    %4 = arith.mulf %1, %3 : vector<512x128xf32>
    %c1 = arith.constant 1 : index
    %c0_3 = arith.constant 0 : index
    %5 = vector.load %arg3[%c1, %c0_3] : memref<2x128xf32, #tpu.memory_space<vmem>>, vector<1x128xf32>
    %6 = vector.broadcast %5 : vector<1x128xf32> to vector<512x128xf32>
    %7 = arith.addf %4, %6 : vector<512x128xf32>
    %cst = arith.constant 0.000000e+00 : f32
    %8 = vector.broadcast %cst : f32 to vector<512x128xf32>
    %9 = arith.maximumf %7, %8 : vector<512x128xf32>
    %c64_i32 = arith.constant 64 : i32
    %10 = tpu.dynamic_rotate %9 by %c64_i32 dim 1 : vector<512x128xf32>, i32 -> vector<512x128xf32>
    %11 = arith.subf %9, %10 : vector<512x128xf32>
    %c0_4 = arith.constant 0 : index
    %c0_5 = arith.constant 0 : index
    %12 = vector.load %arg2[%c0_4, %c0_5] : memref<1x512xf32, #tpu.memory_space<vmem>>, vector<1x512xf32>
    %13 = arith.mulf %11, %11 : vector<512x128xf32>
    %cst_6 = arith.constant dense<0.000000e+00> : vector<1x128xf32>
    %14 = tpu.matmul %12, %13, %cst_6 {dimension_numbers = #tpu.dot_dimension_numbers<[1], [0], [0], [1], [0, 0, 1, 1], [], []>} : vector<1x512xf32>, vector<512x128xf32>, vector<1x128xf32> -> vector<1x128xf32>
    %15 = vector.shape_cast %14 : vector<1x128xf32> to vector<1x1x128xf32>
    %c0_7 = arith.constant 0 : index
    %c0_8 = arith.constant 0 : index
    %c0_9 = arith.constant 0 : index
    %16 = vector.load %arg4[%c0_7, %c0_8, %c0_9] : memref<1x1x128xf32, #tpu.memory_space<vmem>>, vector<1x1x128xf32>
    tpu.vector_store %arg4[%c0_7, %c0_8, %c0_9], %15 {strides = array<i32>} : memref<1x1x128xf32, #tpu.memory_space<vmem>>, vector<1x1x128xf32>,
    return
  }
  func.func @transform_0(%arg0: i32) -> (i32, i32) {
    %c0_i32 = arith.constant 0 : i32
    %c0_i32_0 = arith.constant 0 : i32
    return %arg0, %c0_i32 : i32, i32
  }
  func.func @transform_1(%arg0: i32) -> (i32, i32) {
    %c0_i32 = arith.constant 0 : i32
    %c0_i32_0 = arith.constant 0 : i32
    return %c0_i32, %arg0 : i32, i32
  }
  func.func @transform_2(%arg0: i32) -> (i32, i32) {
    %c0_i32 = arith.constant 0 : i32
    %c0_i32_0 = arith.constant 0 : i32
    %c0_i32_1 = arith.constant 0 : i32
    return %c0_i32, %c0_i32_0 : i32, i32
  }
  func.func @transform_3(%arg0: i32) -> (i32, i32, i32) {
    %c0_i32 = arith.constant 0 : i32
    %c0_i32_0 = arith.constant 0 : i32
    %c0_i32_1 = arith.constant 0 : i32
    return %arg0, %c0_i32, %c0_i32_0 : i32, i32, i32
  }
}

</mosaic_0001>

<llo_original>
// kernel: perceptual_loss.3
$region0: #{perceptual_loss.3}
  #allocation0 [shape = 'u32[]', space=smem, size = 0x4, offset = 0x4, fixed_abs, tag = 'smem constant byte address 0x4 - core index']
  #allocation1 [shape = 'u32[144,128]{1,0:T(1,128)}', space=vmem, size = 0x12000, scoped, tag = 'internal scratch']
  %s0 = inlined_call_operand.vmem [shape: bf16[512,128], index: 0, kind: input, shape index: {}]
  %s1 = inlined_call_operand.vmem [shape: f32[1,512], index: 1, kind: input, shape index: {}]
  %s2 = inlined_call_operand.vmem [shape: f32[2,128], index: 2, kind: input, shape index: {}]
  %s3 = inlined_call_operand.vmem [shape: f32[1,1,128], index: 3, kind: output, shape index: {}]
  %s4 = sld [smem:[#allocation0]]
  $region22: #{perceptual_loss.3} parent=0
    _
  %s6 = ssub.s32 1, %s4
  %s7 = scalar_select 0, %s6, %s4
  // Predicated region
  $region2: #{perceptual_loss.3} parent=0 // pred_check
    _
  $region3: #{perceptual_loss.3} parent=0 // pred_check_branch
    %9 = sbr.rel (0) target = $region5
  $region4: #{perceptual_loss.3} parent=0 // pred_region
    _
  $region5: #{perceptual_loss.3} parent=0 // pred_fallthru
    _
  // Predicated region
  $region6: #{perceptual_loss.3} parent=0 // pred_check
    _
  $region7: #{perceptual_loss.3} parent=0 // pred_check_branch
    %11 = sbr.rel (0) target = $region9
  $region8: #{perceptual_loss.3} parent=0 // pred_region
    _
  $region9: #{perceptual_loss.3} parent=0 // pred_fallthru
    _
  // Predicated region
  $region10: #{perceptual_loss.3} parent=0 // pred_check
    _
  $region11: #{perceptual_loss.3} parent=0 // pred_check_branch
    %13 = sbr.rel (0) target = $region13
  $region12: #{perceptual_loss.3} parent=0 // pred_region
    _
  $region13: #{perceptual_loss.3} parent=0 // pred_fallthru
    _
  %v14 = vld [vmem:[%s0] sm:$0xf]
  %v15 = vld [vmem:[%s0 + $0x4] sm:$0xf]
  %v16 = vld [vmem:[%s0 + $0x8] sm:$0xf]
  %v17 = vld [vmem:[%s0 + $0xc] sm:$0xf]
  %v18 = vld [vmem:[%s0 + $0x10] sm:$0xf]
  %v19 = vld [vmem:[%s0 + $0x14] sm:$0xf]
  %v20 = vld [vmem:[%s0 + $0x18] sm:$0xf]
  %v21 = vld [vmem:[%s0 + $0x1c] sm:$0xf]
  %v22 = vld [vmem:[%s0 + $0x20] sm:$0xf]
  %v23 = vld [vmem:[%s0 + $0x24] sm:$0xf]
  %v24 = vld [vmem:[%s0 + $0x28] sm:$0xf]
  %v25 = vld [vmem:[%s0 + $0x2c] sm:$0xf]
  %v26 = vld [vmem:[%s0 + $0x30] sm:$0xf]
  %v27 = vld [vmem:[%s0 + $0x34] sm:$0xf]
  %v28 = vld [vmem:[%s0 + $0x38] sm:$0xf]
  %v29 = vld [vmem:[%s0 + $0x3c] sm:$0xf]
  %v30 = vld [vmem:[%s0 + $0x40] sm:$0xf]
  %v31 = vld [vmem:[%s0 + $0x44] sm:$0xf]
  %v32 = vld [vmem:[%s0 + $0x48] sm:$0xf]
  %v33 = vld [vmem:[%s0 + $0x4c] sm:$0xf]
  %v34 = vld [vmem:[%s0 + $0x50] sm:$0xf]
  %v35 = vld [vmem:[%s0 + $0x54] sm:$0xf]
  %v36 = vld [vmem:[%s0 + $0x58] sm:$0xf]
  %v37 = vld [vmem:[%s0 + $0x5c] sm:$0xf]
  %v38 = vld [vmem:[%s0 + $0x60] sm:$0xf]
  %v39 = vld [vmem:[%s0 + $0x64] sm:$0xf]
  %v40 = vld [vmem:[%s0 + $0x68] sm:$0xf]
  %v41 = vld [vmem:[%s0 + $0x6c] sm:$0xf]
  %v42 = vld [vmem:[%s0 + $0x70] sm:$0xf]
  %v43 = vld [vmem:[%s0 + $0x74] sm:$0xf]
  %v44 = vld [vmem:[%s0 + $0x78] sm:$0xf]
  %v45 = vld [vmem:[%s0 + $0x7c] sm:$0xf]
  %v46 = vld [vmem:[%s0 + $0x80] sm:$0xf]
  %v47 = vld [vmem:[%s0 + $0x84] sm:$0xf]
  %v48 = vld [vmem:[%s0 + $0x88] sm:$0xf]
  %v49 = vld [vmem:[%s0 + $0x8c] sm:$0xf]
  %v50 = vld [vmem:[%s0 + $0x90] sm:$0xf]
  %v51 = vld [vmem:[%s0 + $0x94] sm:$0xf]
  %v52 = vld [vmem:[%s0 + $0x98] sm:$0xf]
  %v53 = vld [vmem:[%s0 + $0x9c] sm:$0xf]
  %v54 = vld [vmem:[%s0 + $0xa0] sm:$0xf]
  %v55 = vld [vmem:[%s0 + $0xa4] sm:$0xf]
  %v56 = vld [vmem:[%s0 + $0xa8] sm:$0xf]
  %v57 = vld [vmem:[%s0 + $0xac] sm:$0xf]
  %v58 = vld [vmem:[%s0 + $0xb0] sm:$0xf]
  %v59 = vld [vmem:[%s0 + $0xb4] sm:$0xf]
  %v60 = vld [vmem:[%s0 + $0xb8] sm:$0xf]
  %v61 = vld [vmem:[%s0 + $0xbc] sm:$0xf]
  %v62 = vld [vmem:[%s0 + $0xc0] sm:$0xf]
  %v63 = vld [vmem:[%s0 + $0xc4] sm:$0xf]
  %v64 = vld [vmem:[%s0 + $0xc8] sm:$0xf]
  %v65 = vld [vmem:[%s0 + $0xcc] sm:$0xf]
  %v66 = vld [vmem:[%s0 + $0xd0] sm:$0xf]
  %v67 = vld [vmem:[%s0 + $0xd4] sm:$0xf]
  %v68 = vld [vmem:[%s0 + $0xd8] sm:$0xf]
  %v69 = vld [vmem:[%s0 + $0xdc] sm:$0xf]
  %v70 = vld [vmem:[%s0 + $0xe0] sm:$0xf]
  %v71 = vld [vmem:[%s0 + $0xe4] sm:$0xf]
  %v72 = vld [vmem:[%s0 + $0xe8] sm:$0xf]
  %v73 = vld [vmem:[%s0 + $0xec] sm:$0xf]
  %v74 = vld [vmem:[%s0 + $0xf0] sm:$0xf]
  %v75 = vld [vmem:[%s0 + $0xf4] sm:$0xf]
  %v76 = vld [vmem:[%s0 + $0xf8] sm:$0xf]
  %v77 = vld [vmem:[%s0 + $0xfc] sm:$0xf]
  %v78 = vunpack.c.l.bf16 %v14
  %v79 = vunpack.c.l.bf16 %v15
  %v80 = vunpack.c.l.bf16 %v16
  %v81 = vunpack.c.l.bf16 %v17
  %v82 = vunpack.c.l.bf16 %v18
  %v83 = vunpack.c.l.bf16 %v19
  %v84 = vunpack.c.l.bf16 %v20
  %v85 = vunpack.c.l.bf16 %v21
  %v86 = vunpack.c.l.bf16 %v22
  %v87 = vunpack.c.l.bf16 %v23
  %v88 = vunpack.c.l.bf16 %v24
  %v89 = vunpack.c.l.bf16 %v25
  %v90 = vunpack.c.l.bf16 %v26
  %v91 = vunpack.c.l.bf16 %v27
  %v92 = vunpack.c.l.bf16 %v28
  %v93 = vunpack.c.l.bf16 %v29
  %v94 = vunpack.c.l.bf16 %v30
  %v95 = vunpack.c.l.bf16 %v31
  %v96 = vunpack.c.l.bf16 %v32
  %v97 = vunpack.c.l.bf16 %v33
  %v98 = vunpack.c.l.bf16 %v34
  %v99 = vunpack.c.l.bf16 %v35
  %v100 = vunpack.c.l.bf16 %v36
  %v101 = vunpack.c.l.bf16 %v37
  %v102 = vunpack.c.l.bf16 %v38
  %v103 = vunpack.c.l.bf16 %v39
  %v104 = vunpack.c.l.bf16 %v40
  %v105 = vunpack.c.l.bf16 %v41
  %v106 = vunpack.c.l.bf16 %v42
  %v107 = vunpack.c.l.bf16 %v43
  %v108 = vunpack.c.l.bf16 %v44
  %v109 = vunpack.c.l.bf16 %v45
  %v110 = vunpack.c.l.bf16 %v46
  %v111 = vunpack.c.l.bf16 %v47
  %v112 = vunpack.c.l.bf16 %v48
  %v113 = vunpack.c.l.bf16 %v49
  %v114 = vunpack.c.l.bf16 %v50
  %v115 = vunpack.c.l.bf16 %v51
  %v116 = vunpack.c.l.bf16 %v52
  %v117 = vunpack.c.l.bf16 %v53
  %v118 = vunpack.c.l.bf16 %v54
  %v119 = vunpack.c.l.bf16 %v55
  %v120 = vunpack.c.l.bf16 %v56
  %v121 = vunpack.c.l.bf16 %v57
  %v122 = vunpack.c.l.bf16 %v58
  %v123 = vunpack.c.l.bf16 %v59
  %v124 = vunpack.c.l.bf16 %v60
  %v125 = vunpack.c.l.bf16 %v61
  %v126 = vunpack.c.l.bf16 %v62
  %v127 = vunpack.c.l.bf16 %v63
  %v128 = vunpack.c.l.bf16 %v64
  %v129 = vunpack.c.l.bf16 %v65
  %v130 = vunpack.c.l.bf16 %v66
  %v131 = vunpack.c.l.bf16 %v67
  %v132 = vunpack.c.l.bf16 %v68
  %v133 = vunpack.c.l.bf16 %v69
  %v134 = vunpack.c.l.bf16 %v70
  %v135 = vunpack.c.l.bf16 %v71
  %v136 = vunpack.c.l.bf16 %v72
  %v137 = vunpack.c.l.bf16 %v73
  %v138 = vunpack.c.l.bf16 %v74
  %v139 = vunpack.c.l.bf16 %v75
  %v140 = vunpack.c.l.bf16 %v76
  %v141 = vunpack.c.l.bf16 %v77
  %v142 = vld [vmem:[%s2] sm:$0x1]
  %v143 = vlaneseq
  %v144 = vshrl.u32 %v143, 7
  %v145 = vsub.s32 0, %v144
  %v146 = vrot.slane %v142, %v145
  %v147 = vmul.f32 %v78, %v146
  %v148 = vmul.f32 %v79, %v146
  %v149 = vmul.f32 %v80, %v146
  %v150 = vmul.f32 %v81, %v146
  %v151 = vmul.f32 %v82, %v146
  %v152 = vmul.f32 %v83, %v146
  %v153 = vmul.f32 %v84, %v146
  %v154 = vmul.f32 %v85, %v146
  %v155 = vmul.f32 %v86, %v146
  %v156 = vmul.f32 %v87, %v146
  %v157 = vmul.f32 %v88, %v146
  %v158 = vmul.f32 %v89, %v146
  %v159 = vmul.f32 %v90, %v146
  %v160 = vmul.f32 %v91, %v146
  %v161 = vmul.f32 %v92, %v146
  %v162 = vmul.f32 %v93, %v146
  %v163 = vmul.f32 %v94, %v146
  %v164 = vmul.f32 %v95, %v146
  %v165 = vmul.f32 %v96, %v146
  %v166 = vmul.f32 %v97, %v146
  %v167 = vmul.f32 %v98, %v146
  %v168 = vmul.f32 %v99, %v146
  %v169 = vmul.f32 %v100, %v146
  %v170 = vmul.f32 %v101, %v146
  %v171 = vmul.f32 %v102, %v146
  %v172 = vmul.f32 %v103, %v146
  %v173 = vmul.f32 %v104, %v146
  %v174 = vmul.f32 %v105, %v146
  %v175 = vmul.f32 %v106, %v146
  %v176 = vmul.f32 %v107, %v146
  %v177 = vmul.f32 %v108, %v146
  %v178 = vmul.f32 %v109, %v146
  %v179 = vmul.f32 %v110, %v146
  %v180 = vmul.f32 %v111, %v146
  %v181 = vmul.f32 %v112, %v146
  %v182 = vmul.f32 %v113, %v146
  %v183 = vmul.f32 %v114, %v146
  %v184 = vmul.f32 %v115, %v146
  %v185 = vmul.f32 %v116, %v146
  %v186 = vmul.f32 %v117, %v146
  %v187 = vmul.f32 %v118, %v146
  %v188 = vmul.f32 %v119, %v146
  %v189 = vmul.f32 %v120, %v146
  %v190 = vmul.f32 %v121, %v146
  %v191 = vmul.f32 %v122, %v146
  %v192 = vmul.f32 %v123, %v146
  %v193 = vmul.f32 %v124, %v146
  %v194 = vmul.f32 %v125, %v146
  %v195 = vmul.f32 %v126, %v146
  %v196 = vmul.f32 %v127, %v146
  %v197 = vmul.f32 %v128, %v146
  %v198 = vmul.f32 %v129, %v146
  %v199 = vmul.f32 %v130, %v146
  %v200 = vmul.f32 %v131, %v146
  %v201 = vmul.f32 %v132, %v146
  %v202 = vmul.f32 %v133, %v146
  %v203 = vmul.f32 %v134, %v146
  %v204 = vmul.f32 %v135, %v146
  %v205 = vmul.f32 %v136, %v146
  %v206 = vmul.f32 %v137, %v146
  %v207 = vmul.f32 %v138, %v146
  %v208 = vmul.f32 %v139, %v146
  %v209 = vmul.f32 %v140, %v146
  %v210 = vmul.f32 %v141, %v146
  %v211 = vld [vmem:[%s2 + $0x1] sm:$0x1]
  %v212 = vlaneseq
  %v213 = vshrl.u32 %v212, 7
  %v214 = vsub.s32 0, %v213
  %v215 = vrot.slane %v211, %v214
  %v216 = vadd.f32 %v147, %v215
  %v217 = vadd.f32 %v148, %v215
  %v218 = vadd.f32 %v149, %v215
  %v219 = vadd.f32 %v150, %v215
  %v220 = vadd.f32 %v151, %v215
  %v221 = vadd.f32 %v152, %v215
  %v222 = vadd.f32 %v153, %v215
  %v223 = vadd.f32 %v154, %v215
  %v224 = vadd.f32 %v155, %v215
  %v225 = vadd.f32 %v156, %v215
  %v226 = vadd.f32 %v157, %v215
  %v227 = vadd.f32 %v158, %v215
  %v228 = vadd.f32 %v159, %v215
  %v229 = vadd.f32 %v160, %v215
  %v230 = vadd.f32 %v161, %v215
  %v231 = vadd.f32 %v162, %v215
  %v232 = vadd.f32 %v163, %v215
  %v233 = vadd.f32 %v164, %v215
  %v234 = vadd.f32 %v165, %v215
  %v235 = vadd.f32 %v166, %v215
  %v236 = vadd.f32 %v167, %v215
  %v237 = vadd.f32 %v168, %v215
  %v238 = vadd.f32 %v169, %v215
  %v239 = vadd.f32 %v170, %v215
  %v240 = vadd.f32 %v171, %v215
  %v241 = vadd.f32 %v172, %v215
  %v242 = vadd.f32 %v173, %v215
  %v243 = vadd.f32 %v174, %v215
  %v244 = vadd.f32 %v175, %v215
  %v245 = vadd.f32 %v176, %v215
  %v246 = vadd.f32 %v177, %v215
  %v247 = vadd.f32 %v178, %v215
  %v248 = vadd.f32 %v179, %v215
  %v249 = vadd.f32 %v180, %v215
  %v250 = vadd.f32 %v181, %v215
  %v251 = vadd.f32 %v182, %v215
  %v252 = vadd.f32 %v183, %v215
  %v253 = vadd.f32 %v184, %v215
  %v254 = vadd.f32 %v185, %v215
  %v255 = vadd.f32 %v186, %v215
  %v256 = vadd.f32 %v187, %v215
  %v257 = vadd.f32 %v188, %v215
  %v258 = vadd.f32 %v189, %v215
  %v259 = vadd.f32 %v190, %v215
  %v260 = vadd.f32 %v191, %v215
  %v261 = vadd.f32 %v192, %v215
  %v262 = vadd.f32 %v193, %v215
  %v263 = vadd.f32 %v194, %v215
  %v264 = vadd.f32 %v195, %v215
  %v265 = vadd.f32 %v196, %v215
  %v266 = vadd.f32 %v197, %v215
  %v267 = vadd.f32 %v198, %v215
  %v268 = vadd.f32 %v199, %v215
  %v269 = vadd.f32 %v200, %v215
  %v270 = vadd.f32 %v201, %v215
  %v271 = vadd.f32 %v202, %v215
  %v272 = vadd.f32 %v203, %v215
  %v273 = vadd.f32 %v204, %v215
  %v274 = vadd.f32 %v205, %v215
  %v275 = vadd.f32 %v206, %v215
  %v276 = vadd.f32 %v207, %v215
  %v277 = vadd.f32 %v208, %v215
  %v278 = vadd.f32 %v209, %v215
  %v279 = vadd.f32 %v210, %v215
  %v280 = vmax.f32 %v216, 0.0
  %v281 = vmax.f32 %v217, 0.0
  %v282 = vmax.f32 %v218, 0.0
  %v283 = vmax.f32 %v219, 0.0
  %v284 = vmax.f32 %v220, 0.0
  %v285 = vmax.f32 %v221, 0.0
  %v286 = vmax.f32 %v222, 0.0
  %v287 = vmax.f32 %v223, 0.0
  %v288 = vmax.f32 %v224, 0.0
  %v289 = vmax.f32 %v225, 0.0
  %v290 = vmax.f32 %v226, 0.0
  %v291 = vmax.f32 %v227, 0.0
  %v292 = vmax.f32 %v228, 0.0
  %v293 = vmax.f32 %v229, 0.0
  %v294 = vmax.f32 %v230, 0.0
  %v295 = vmax.f32 %v231, 0.0
  %v296 = vmax.f32 %v232, 0.0
  %v297 = vmax.f32 %v233, 0.0
  %v298 = vmax.f32 %v234, 0.0
  %v299 = vmax.f32 %v235, 0.0
  %v300 = vmax.f32 %v236, 0.0
  %v301 = vmax.f32 %v237, 0.0
  %v302 = vmax.f32 %v238, 0.0
  %v303 = vmax.f32 %v239, 0.0
  %v304 = vmax.f32 %v240, 0.0
  %v305 = vmax.f32 %v241, 0.0
  %v306 = vmax.f32 %v242, 0.0
  %v307 = vmax.f32 %v243, 0.0
  %v308 = vmax.f32 %v244, 0.0
  %v309 = vmax.f32 %v245, 0.0
  %v310 = vmax.f32 %v246, 0.0
  %v311 = vmax.f32 %v247, 0.0
  %v312 = vmax.f32 %v248, 0.0
  %v313 = vmax.f32 %v249, 0.0
  %v314 = vmax.f32 %v250, 0.0
  %v315 = vmax.f32 %v251, 0.0
  %v316 = vmax.f32 %v252, 0.0
  %v317 = vmax.f32 %v253, 0.0
  %v318 = vmax.f32 %v254, 0.0
  %v319 = vmax.f32 %v255, 0.0
  %v320 = vmax.f32 %v256, 0.0
  %v321 = vmax.f32 %v257, 0.0
  %v322 = vmax.f32 %v258, 0.0
  %v323 = vmax.f32 %v259, 0.0
  %v324 = vmax.f32 %v260, 0.0
  %v325 = vmax.f32 %v261, 0.0
  %v326 = vmax.f32 %v262, 0.0
  %v327 = vmax.f32 %v263, 0.0
  %v328 = vmax.f32 %v264, 0.0
  %v329 = vmax.f32 %v265, 0.0
  %v330 = vmax.f32 %v266, 0.0
  %v331 = vmax.f32 %v267, 0.0
  %v332 = vmax.f32 %v268, 0.0
  %v333 = vmax.f32 %v269, 0.0
  %v334 = vmax.f32 %v270, 0.0
  %v335 = vmax.f32 %v271, 0.0
  %v336 = vmax.f32 %v272, 0.0
  %v337 = vmax.f32 %v273, 0.0
  %v338 = vmax.f32 %v274, 0.0
  %v339 = vmax.f32 %v275, 0.0
  %v340 = vmax.f32 %v276, 0.0
  %v341 = vmax.f32 %v277, 0.0
  %v342 = vmax.f32 %v278, 0.0
  %v343 = vmax.f32 %v279, 0.0
  %344 = vrot.lane.b32.xlu0 %v280, 64
  %v345 = vpop.permute.xlu0 %344
  %346 = vrot.lane.b32.xlu0 %v281, 64
  %v347 = vpop.permute.xlu0 %346
  %348 = vrot.lane.b32.xlu0 %v282, 64
  %v349 = vpop.permute.xlu0 %348
  %350 = vrot.lane.b32.xlu0 %v283, 64
  %v351 = vpop.permute.xlu0 %350
  %352 = vrot.lane.b32.xlu0 %v284, 64
  %v353 = vpop.permute.xlu0 %352
  %354 = vrot.lane.b32.xlu0 %v285, 64
  %v355 = vpop.permute.xlu0 %354
  %356 = vrot.lane.b32.xlu0 %v286, 64
  %v357 = vpop.permute.xlu0 %356
  %358 = vrot.lane.b32.xlu0 %v287, 64
  %v359 = vpop.permute.xlu0 %358
  %360 = vrot.lane.b32.xlu0 %v288, 64
  %v361 = vpop.permute.xlu0 %360
  %362 = vrot.lane.b32.xlu0 %v289, 64
  %v363 = vpop.permute.xlu0 %362
  %364 = vrot.lane.b32.xlu0 %v290, 64
  %v365 = vpop.permute.xlu0 %364
  %366 = vrot.lane.b32.xlu0 %v291, 64
  %v367 = vpop.permute.xlu0 %366
  %368 = vrot.lane.b32.xlu0 %v292, 64
  %v369 = vpop.permute.xlu0 %368
  %370 = vrot.lane.b32.xlu0 %v293, 64
  %v371 = vpop.permute.xlu0 %370
  %372 = vrot.lane.b32.xlu0 %v294, 64
  %v373 = vpop.permute.xlu0 %372
  %374 = vrot.lane.b32.xlu0 %v295, 64
  %v375 = vpop.permute.xlu0 %374
  %376 = vrot.lane.b32.xlu0 %v296, 64
  %v377 = vpop.permute.xlu0 %376
  %378 = vrot.lane.b32.xlu0 %v297, 64
  %v379 = vpop.permute.xlu0 %378
  %380 = vrot.lane.b32.xlu0 %v298, 64
  %v381 = vpop.permute.xlu0 %380
  %382 = vrot.lane.b32.xlu0 %v299, 64
  %v383 = vpop.permute.xlu0 %382
  %384 = vrot.lane.b32.xlu0 %v300, 64
  %v385 = vpop.permute.xlu0 %384
  %386 = vrot.lane.b32.xlu0 %v301, 64
  %v387 = vpop.permute.xlu0 %386
  %388 = vrot.lane.b32.xlu0 %v302, 64
  %v389 = vpop.permute.xlu0 %388
  %390 = vrot.lane.b32.xlu0 %v303, 64
  %v391 = vpop.permute.xlu0 %390
  %392 = vrot.lane.b32.xlu0 %v304, 64
  %v393 = vpop.permute.xlu0 %392
  %394 = vrot.lane.b32.xlu0 %v305, 64
  %v395 = vpop.permute.xlu0 %394
  %396 = vrot.lane.b32.xlu0 %v306, 64
  %v397 = vpop.permute.xlu0 %396
  %398 = vrot.lane.b32.xlu0 %v307, 64
  %v399 = vpop.permute.xlu0 %398
  %400 = vrot.lane.b32.xlu0 %v308, 64
  %v401 = vpop.permute.xlu0 %400
  %402 = vrot.lane.b32.xlu0 %v309, 64
  %v403 = vpop.permute.xlu0 %402
  %404 = vrot.lane.b32.xlu0 %v310, 64
  %v405 = vpop.permute.xlu0 %404
  %406 = vrot.lane.b32.xlu0 %v311, 64
  %v407 = vpop.permute.xlu0 %406
  %408 = vrot.lane.b32.xlu0 %v312, 64
  %v409 = vpop.permute.xlu0 %408
  %410 = vrot.lane.b32.xlu0 %v313, 64
  %v411 = vpop.permute.xlu0 %410
  %412 = vrot.lane.b32.xlu0 %v314, 64
  %v413 = vpop.permute.xlu0 %412
  %414 = vrot.lane.b32.xlu0 %v315, 64
  %v415 = vpop.permute.xlu0 %414
  %416 = vrot.lane.b32.xlu0 %v316, 64
  %v417 = vpop.permute.xlu0 %416
  %418 = vrot.lane.b32.xlu0 %v317, 64
  %v419 = vpop.permute.xlu0 %418
  %420 = vrot.lane.b32.xlu0 %v318, 64
  %v421 = vpop.permute.xlu0 %420
  %422 = vrot.lane.b32.xlu0 %v319, 64
  %v423 = vpop.permute.xlu0 %422
  %424 = vrot.lane.b32.xlu0 %v320, 64
  %v425 = vpop.permute.xlu0 %424
  %426 = vrot.lane.b32.xlu0 %v321, 64
  %v427 = vpop.permute.xlu0 %426
  %428 = vrot.lane.b32.xlu0 %v322, 64
  %v429 = vpop.permute.xlu0 %428
  %430 = vrot.lane.b32.xlu0 %v323, 64
  %v431 = vpop.permute.xlu0 %430
  %432 = vrot.lane.b32.xlu0 %v324, 64
  %v433 = vpop.permute.xlu0 %432
  %434 = vrot.lane.b32.xlu0 %v325, 64
  %v435 = vpop.permute.xlu0 %434
  %436 = vrot.lane.b32.xlu0 %v326, 64
  %v437 = vpop.permute.xlu0 %436
  %438 = vrot.lane.b32.xlu0 %v327, 64
  %v439 = vpop.permute.xlu0 %438
  %440 = vrot.lane.b32.xlu0 %v328, 64
  %v441 = vpop.permute.xlu0 %440
  %442 = vrot.lane.b32.xlu0 %v329, 64
  %v443 = vpop.permute.xlu0 %442
  %444 = vrot.lane.b32.xlu0 %v330, 64
  %v445 = vpop.permute.xlu0 %444
  %446 = vrot.lane.b32.xlu0 %v331, 64
  %v447 = vpop.permute.xlu0 %446
  %448 = vrot.lane.b32.xlu0 %v332, 64
  %v449 = vpop.permute.xlu0 %448
  %450 = vrot.lane.b32.xlu0 %v333, 64
  %v451 = vpop.permute.xlu0 %450
  %452 = vrot.lane.b32.xlu0 %v334, 64
  %v453 = vpop.permute.xlu0 %452
  %454 = vrot.lane.b32.xlu0 %v335, 64
  %v455 = vpop.permute.xlu0 %454
  %456 = vrot.lane.b32.xlu0 %v336, 64
  %v457 = vpop.permute.xlu0 %456
  %458 = vrot.lane.b32.xlu0 %v337, 64
  %v459 = vpop.permute.xlu0 %458
  %460 = vrot.lane.b32.xlu0 %v338, 64
  %v461 = vpop.permute.xlu0 %460
  %462 = vrot.lane.b32.xlu0 %v339, 64
  %v463 = vpop.permute.xlu0 %462
  %464 = vrot.lane.b32.xlu0 %v340, 64
  %v465 = vpop.permute.xlu0 %464
  %466 = vrot.lane.b32.xlu0 %v341, 64
  %v467 = vpop.permute.xlu0 %466
  %468 = vrot.lane.b32.xlu0 %v342, 64
  %v469 = vpop.permute.xlu0 %468
  %470 = vrot.lane.b32.xlu0 %v343, 64
  %v471 = vpop.permute.xlu0 %470
  %v472 = vsub.f32 %v280, %v345
  %v473 = vsub.f32 %v281, %v347
  %v474 = vsub.f32 %v282, %v349
  %v475 = vsub.f32 %v283, %v351
  %v476 = vsub.f32 %v284, %v353
  %v477 = vsub.f32 %v285, %v355
  %v478 = vsub.f32 %v286, %v357
  %v479 = vsub.f32 %v287, %v359
  %v480 = vsub.f32 %v288, %v361
  %v481 = vsub.f32 %v289, %v363
  %v482 = vsub.f32 %v290, %v365
  %v483 = vsub.f32 %v291, %v367
  %v484 = vsub.f32 %v292, %v369
  %v485 = vsub.f32 %v293, %v371
  %v486 = vsub.f32 %v294, %v373
  %v487 = vsub.f32 %v295, %v375
  %v488 = vsub.f32 %v296, %v377
  %v489 = vsub.f32 %v297, %v379
  %v490 = vsub.f32 %v298, %v381
  %v491 = vsub.f32 %v299, %v383
  %v492 = vsub.f32 %v300, %v385
  %v493 = vsub.f32 %v301, %v387
  %v494 = vsub.f32 %v302, %v389
  %v495 = vsub.f32 %v303, %v391
  %v496 = vsub.f32 %v304, %v393
  %v497 = vsub.f32 %v305, %v395
  %v498 = vsub.f32 %v306, %v397
  %v499 = vsub.f32 %v307, %v399
  %v500 = vsub.f32 %v308, %v401
  %v501 = vsub.f32 %v309, %v403
  %v502 = vsub.f32 %v310, %v405
  %v503 = vsub.f32 %v311, %v407
  %v504 = vsub.f32 %v312, %v409
  %v505 = vsub.f32 %v313, %v411
  %v506 = vsub.f32 %v314, %v413
  %v507 = vsub.f32 %v315, %v415
  %v508 = vsub.f32 %v316, %v417
  %v509 = vsub.f32 %v317, %v419
  %v510 = vsub.f32 %v318, %v421
  %v511 = vsub.f32 %v319, %v423
  %v512 = vsub.f32 %v320, %v425
  %v513 = vsub.f32 %v321, %v427
  %v514 = vsub.f32 %v322, %v429
  %v515 = vsub.f32 %v323, %v431
  %v516 = vsub.f32 %v324, %v433
  %v517 = vsub.f32 %v325, %v435
  %v518 = vsub.f32 %v326, %v437
  %v519 = vsub.f32 %v327, %v439
  %v520 = vsub.f32 %v328, %v441
  %v521 = vsub.f32 %v329, %v443
  %v522 = vsub.f32 %v330, %v445
  %v523 = vsub.f32 %v331, %v447
  %v524 = vsub.f32 %v332, %v449
  %v525 = vsub.f32 %v333, %v451
  %v526 = vsub.f32 %v334, %v453
  %v527 = vsub.f32 %v335, %v455
  %v528 = vsub.f32 %v336, %v457
  %v529 = vsub.f32 %v337, %v459
  %v530 = vsub.f32 %v338, %v461
  %v531 = vsub.f32 %v339, %v463
  %v532 = vsub.f32 %v340, %v465
  %v533 = vsub.f32 %v341, %v467
  %v534 = vsub.f32 %v342, %v469
  %v535 = vsub.f32 %v343, %v471
  %v536 = vld [vmem:[%s1] sm:$0xf]
  %v537 = vmul.f32 %v472, %v472
  %v538 = vmul.f32 %v473, %v473
  %v539 = vmul.f32 %v474, %v474
  %v540 = vmul.f32 %v475, %v475
  %v541 = vmul.f32 %v476, %v476
  %v542 = vmul.f32 %v477, %v477
  %v543 = vmul.f32 %v478, %v478
  %v544 = vmul.f32 %v479, %v479
  %v545 = vmul.f32 %v480, %v480
  %v546 = vmul.f32 %v481, %v481
  %v547 = vmul.f32 %v482, %v482
  %v548 = vmul.f32 %v483, %v483
  %v549 = vmul.f32 %v484, %v484
  %v550 = vmul.f32 %v485, %v485
  %v551 = vmul.f32 %v486, %v486
  %v552 = vmul.f32 %v487, %v487
  %v553 = vmul.f32 %v488, %v488
  %v554 = vmul.f32 %v489, %v489
  %v555 = vmul.f32 %v490, %v490
  %v556 = vmul.f32 %v491, %v491
  %v557 = vmul.f32 %v492, %v492
  %v558 = vmul.f32 %v493, %v493
  %v559 = vmul.f32 %v494, %v494
  %v560 = vmul.f32 %v495, %v495
  %v561 = vmul.f32 %v496, %v496
  %v562 = vmul.f32 %v497, %v497
  %v563 = vmul.f32 %v498, %v498
  %v564 = vmul.f32 %v499, %v499
  %v565 = vmul.f32 %v500, %v500
  %v566 = vmul.f32 %v501, %v501
  %v567 = vmul.f32 %v502, %v502
  %v568 = vmul.f32 %v503, %v503
  %v569 = vmul.f32 %v504, %v504
  %v570 = vmul.f32 %v505, %v505
  %v571 = vmul.f32 %v506, %v506
  %v572 = vmul.f32 %v507, %v507
  %v573 = vmul.f32 %v508, %v508
  %v574 = vmul.f32 %v509, %v509
  %v575 = vmul.f32 %v510, %v510
  %v576 = vmul.f32 %v511, %v511
  %v577 = vmul.f32 %v512, %v512
  %v578 = vmul.f32 %v513, %v513
  %v579 = vmul.f32 %v514, %v514
  %v580 = vmul.f32 %v515, %v515
  %v581 = vmul.f32 %v516, %v516
  %v582 = vmul.f32 %v517, %v517
  %v583 = vmul.f32 %v518, %v518
  %v584 = vmul.f32 %v519, %v519
  %v585 = vmul.f32 %v520, %v520
  %v586 = vmul.f32 %v521, %v521
  %v587 = vmul.f32 %v522, %v522
  %v588 = vmul.f32 %v523, %v523
  %v589 = vmul.f32 %v524, %v524
  %v590 = vmul.f32 %v525, %v525
  %v591 = vmul.f32 %v526, %v526
  %v592 = vmul.f32 %v527, %v527
  %v593 = vmul.f32 %v528, %v528
  %v594 = vmul.f32 %v529, %v529
  %v595 = vmul.f32 %v530, %v530
  %v596 = vmul.f32 %v531, %v531
  %v597 = vmul.f32 %v532, %v532
  %v598 = vmul.f32 %v533, %v533
  %v599 = vmul.f32 %v534, %v534
  %v600 = vmul.f32 %v535, %v535
  %v602 = vlaneseq
  %v603 = vshrl.u32 %v602, 7
  %v604 = vsub.s32 0, %v603
  %v605 = vrot.slane %v536, %v604
  %v606 = vlaneseq
  %v607 = vshrl.u32 %v606, 7
  %v608 = vsub.s32 1, %v607
  %v609 = vrot.slane %v536, %v608
  %v610 = vlaneseq
  %v611 = vshrl.u32 %v610, 7
  %v612 = vsub.s32 2, %v611
  %v613 = vrot.slane %v536, %v612
  %v614 = vlaneseq
  %v615 = vshrl.u32 %v614, 7
  %v616 = vsub.s32 3, %v615
  %v617 = vrot.slane %v536, %v616
  %622 = vmatprep.subr.mxu0 0.0
  %623 = vmatpush1.msra.mxu0 %v537
  %624 = vmatprep.subr.mxu0 0.0
  %625 = vmatpush1.msra.mxu0 %v538
  %626 = vmatprep.subr.mxu0 0.0
  %627 = vmatpush1.msra.mxu0 %v539
  %628 = vmatprep.subr.mxu0 0.0
  %629 = vmatpush1.msra.mxu0 %v540
  %630 = vmatprep.subr.mxu0 0.0
  %631 = vmatpush1.msra.mxu0 %v541
  %632 = vmatprep.subr.mxu0 0.0
  %633 = vmatpush1.msra.mxu0 %v542
  %634 = vmatprep.subr.mxu0 0.0
  %635 = vmatpush1.msra.mxu0 %v543
  %636 = vmatprep.subr.mxu0 0.0
  %637 = vmatpush1.msra.mxu0 %v544
  %638 = vmatprep.subr.mxu0 0.0
  %639 = vmatpush1.msra.mxu0 %v545
  %640 = vmatprep.subr.mxu0 0.0
  %641 = vmatpush1.msra.mxu0 %v546
  %642 = vmatprep.subr.mxu0 0.0
  %643 = vmatpush1.msra.mxu0 %v547
  %644 = vmatprep.subr.mxu0 0.0
  %645 = vmatpush1.msra.mxu0 %v548
  %646 = vmatprep.subr.mxu0 0.0
  %647 = vmatpush1.msra.mxu0 %v549
  %648 = vmatprep.subr.mxu0 0.0
  %649 = vmatpush1.msra.mxu0 %v550
  %650 = vmatprep.subr.mxu0 0.0
  %651 = vmatpush1.msra.mxu0 %v551
  %652 = vmatprep.subr.mxu0 0.0
  %653 = vmatpush1.msra.mxu0 %v552
  %654 = vmatprep.subr.mxu0 0.0
  %655 = vmatpush1.msra.mxu0 %v553
  %656 = vmatprep.subr.mxu0 0.0
  %657 = vmatpush1.msra.mxu0 %v554
  %658 = vmatprep.subr.mxu0 0.0
  %659 = vmatpush1.msra.mxu0 %v555
  %660 = vmatprep.subr.mxu0 0.0
  %661 = vmatpush1.msra.mxu0 %v556
  %662 = vmatprep.subr.mxu0 0.0
  %663 = vmatpush1.msra.mxu0 %v557
  %664 = vmatprep.subr.mxu0 0.0
  %665 = vmatpush1.msra.mxu0 %v558
  %666 = vmatprep.subr.mxu0 0.0
  %667 = vmatpush1.msra.mxu0 %v559
  %668 = vmatprep.subr.mxu0 0.0
  %669 = vmatpush1.msra.mxu0 %v560
  %670 = vmatprep.subr.mxu0 0.0
  %671 = vmatpush1.msra.mxu0 %v561
  %672 = vmatprep.subr.mxu0 0.0
  %673 = vmatpush1.msra.mxu0 %v562
  %674 = vmatprep.subr.mxu0 0.0
  %675 = vmatpush1.msra.mxu0 %v563
  %676 = vmatprep.subr.mxu0 0.0
  %677 = vmatpush1.msra.mxu0 %v564
  %678 = vmatprep.subr.mxu0 0.0
  %679 = vmatpush1.msra.mxu0 %v565
  %680 = vmatprep.subr.mxu0 0.0
  %681 = vmatpush1.msra.mxu0 %v566
  %682 = vmatprep.subr.mxu0 0.0
  %683 = vmatpush1.msra.mxu0 %v567
  %684 = vmatprep.subr.mxu0 0.0
  %685 = vmatpush1.msra.mxu0 %v568
  %686 = vmatprep.mubr.f32.mxu0 %v609
  %687 = vmatmul.mubr.f32.gmra.mrb[0].mxu0 %v605
  %v688 = vpop.f32.mrb[0].mxu0
  %v689 = vadd.f32 0.0, %v688
  %v690 = vpop.f32.mrb[0].mxu0
  %691 = vdwg.mxu0
  %692 = vmatprep.subr.mxu0 0.0
  %693 = vmatpush1.msra.mxu0 %v569
  %694 = vmatprep.subr.mxu0 0.0
  %695 = vmatpush1.msra.mxu0 %v570
  %696 = vmatprep.subr.mxu0 0.0
  %697 = vmatpush1.msra.mxu0 %v571
  %698 = vmatprep.subr.mxu0 0.0
  %699 = vmatpush1.msra.mxu0 %v572
  %700 = vmatprep.subr.mxu0 0.0
  %701 = vmatpush1.msra.mxu0 %v573
  %702 = vmatprep.subr.mxu0 0.0
  %703 = vmatpush1.msra.mxu0 %v574
  %704 = vmatprep.subr.mxu0 0.0
  %705 = vmatpush1.msra.mxu0 %v575
  %706 = vmatprep.subr.mxu0 0.0
  %707 = vmatpush1.msra.mxu0 %v576
  %708 = vmatprep.subr.mxu0 0.0
  %709 = vmatpush1.msra.mxu0 %v577
  %710 = vmatprep.subr.mxu0 0.0
  %711 = vmatpush1.msra.mxu0 %v578
  %712 = vmatprep.subr.mxu0 0.0
  %713 = vmatpush1.msra.mxu0 %v579
  %714 = vmatprep.subr.mxu0 0.0
  %715 = vmatpush1.msra.mxu0 %v580
  %716 = vmatprep.subr.mxu0 0.0
  %717 = vmatpush1.msra.mxu0 %v581
  %718 = vmatprep.subr.mxu0 0.0
  %719 = vmatpush1.msra.mxu0 %v582
  %720 = vmatprep.subr.mxu0 0.0
  %721 = vmatpush1.msra.mxu0 %v583
  %722 = vmatprep.subr.mxu0 0.0
  %723 = vmatpush1.msra.mxu0 %v584
  %724 = vmatprep.subr.mxu0 0.0
  %725 = vmatpush1.msra.mxu0 %v585
  %726 = vmatprep.subr.mxu0 0.0
  %727 = vmatpush1.msra.mxu0 %v586
  %728 = vmatprep.subr.mxu0 0.0
  %729 = vmatpush1.msra.mxu0 %v587
  %730 = vmatprep.subr.mxu0 0.0
  %731 = vmatpush1.msra.mxu0 %v588
  %732 = vmatprep.subr.mxu0 0.0
  %733 = vmatpush1.msra.mxu0 %v589
  %734 = vmatprep.subr.mxu0 0.0
  %735 = vmatpush1.msra.mxu0 %v590
  %736 = vmatprep.subr.mxu0 0.0
  %737 = vmatpush1.msra.mxu0 %v591
  %738 = vmatprep.subr.mxu0 0.0
  %739 = vmatpush1.msra.mxu0 %v592
  %740 = vmatprep.subr.mxu0 0.0
  %741 = vmatpush1.msra.mxu0 %v593
  %742 = vmatprep.subr.mxu0 0.0
  %743 = vmatpush1.msra.mxu0 %v594
  %744 = vmatprep.subr.mxu0 0.0
  %745 = vmatpush1.msra.mxu0 %v595
  %746 = vmatprep.subr.mxu0 0.0
  %747 = vmatpush1.msra.mxu0 %v596
  %748 = vmatprep.subr.mxu0 0.0
  %749 = vmatpush1.msra.mxu0 %v597
  %750 = vmatprep.subr.mxu0 0.0
  %751 = vmatpush1.msra.mxu0 %v598
  %752 = vmatprep.subr.mxu0 0.0
  %753 = vmatpush1.msra.mxu0 %v599
  %754 = vmatprep.subr.mxu0 0.0
  %755 = vmatpush1.msra.mxu0 %v600
  %756 = vmatprep.mubr.f32.mxu0 %v617
  %757 = vmatmul.mubr.f32.gmra.mrb[0].mxu0 %v613
  %v758 = vpop.f32.mrb[0].mxu0
  %v759 = vadd.f32 %v689, %v758
  %v760 = vpop.f32.mrb[0].mxu0
  %761 = vdwg.mxu0
  %762 = vst [vmem:[%s3] sm:$0x1] %v759
  // Predicated region
  $region14: #{perceptual_loss.3} parent=0 // pred_check
    _
  $region15: #{perceptual_loss.3} parent=0 // pred_check_branch
    %764 = sbr.rel (0) target = $region17
  $region16: #{perceptual_loss.3} parent=0 // pred_region
    _
  $region17: #{perceptual_loss.3} parent=0 // pred_fallthru
    _
  // Predicated region
  $region18: #{perceptual_loss.3} parent=0 // pred_check
    _
  $region19: #{perceptual_loss.3} parent=0 // pred_check_branch
    %766 = sbr.rel (0) target = $region21
  $region20: #{perceptual_loss.3} parent=0 // pred_region
    _
  $region21: #{perceptual_loss.3} parent=0 // pred_fallthru
    _

// kernel: perceptual_loss.2
$region0: #{perceptual_loss.2}
  #allocation0 [shape = 'u32[]', space=smem, size = 0x4, offset = 0x4, fixed_abs, tag = 'smem constant byte address 0x4 - core index']
  #allocation1 [shape = 'u32[144,128]{1,0:T(1,128)}', space=vmem, size = 0x12000, scoped, tag = 'internal scratch']
  %s0 = inlined_call_operand.vmem [shape: bf16[512,147], index: 0, kind: input, shape index: {}]
  %s1 = inlined_call_operand.vmem [shape: bf16[512,147], index: 1, kind: input, shape index: {}]
  %s2 = inlined_call_operand.vmem [shape: bf16[147,64], index: 2, kind: input, shape index: {}]
  %s3 = inlined_call_operand.vmem [shape: bf16[512,128], index: 3, kind: output, shape index: {0}]
  %s4 = inlined_call_operand.vmem [shape: f32[1,2,128], index: 4, kind: output, shape index: {1}]
  %5 = xla_tuple %s3, %s4
  %s6 = sld [smem:[#allocation0]]
  $region30: #{perceptual_loss.2} parent=0
    _
  %s8 = ssub.s32 1, %s6
  %s9 = scalar_select 0, %s8, %s6
  // Predicated region
  $region2: #{perceptual_loss.2} parent=0 // pred_check
    _
  $region3: #{perceptual_loss.2} parent=0 // pred_check_branch
    %11 = sbr.rel (0) target = $region5
  $region4: #{perceptual_loss.2} parent=0 // pred_region
    _
  $region5: #{perceptual_loss.2} parent=0 // pred_fallthru
    _
  // Predicated region
  $region6: #{perceptual_loss.2} parent=0 // pred_check
    _
  $region7: #{perceptual_loss.2} parent=0 // pred_check_branch
    %13 = sbr.rel (0) target = $region9
  $region8: #{perceptual_loss.2} parent=0 // pred_region
    _
  $region9: #{perceptual_loss.2} parent=0 // pred_fallthru
    _
  // Predicated region
  $region10: #{perceptual_loss.2} parent=0 // pred_check
    _
  $region11: #{perceptual_loss.2} parent=0 // pred_check_branch
    %15 = sbr.rel (0) target = $region13
  $region12: #{perceptual_loss.2} parent=0 // pred_region
    _
  $region13: #{perceptual_loss.2} parent=0 // pred_fallthru
    _
  %v17 = vld [vmem:[%s2] sm:$0xf]
  %v18 = vld [vmem:[%s2 + $0x4] sm:$0xf]
  %v19 = vld [vmem:[%s2 + $0x8] sm:$0xf]
  %v20 = vld [vmem:[%s2 + $0xc] sm:$0xf]
  %v21 = vld [vmem:[%s2 + $0x10] sm:$0xf]
  %v22 = vld [vmem:[%s2 + $0x14] sm:$0xf]
  %v23 = vld [vmem:[%s2 + $0x18] sm:$0xf]
  %v24 = vld [vmem:[%s2 + $0x1c] sm:$0xf]
  %v25 = vld [vmem:[%s2 + $0x20] sm:$0xf]
  %v26 = vld [vmem:[%s2 + $0x24] sm:$0xf]
  %v27 = vld [vmem:[%s2 + $0x28] sm:$0xf]
  %v28 = vld [vmem:[%s2 + $0x2c] sm:$0xf]
  %v29 = vld [vmem:[%s2 + $0x30] sm:$0xf]
  %v30 = vld [vmem:[%s2 + $0x34] sm:$0xf]
  %v31 = vld [vmem:[%s2 + $0x38] sm:$0xf]
  %v32 = vld [vmem:[%s2 + $0x3c] sm:$0xf]
  %v33 = vld [vmem:[%s2 + $0x40] sm:$0xf]
  %v34 = vld [vmem:[%s2 + $0x44] sm:$0xf]
  %v35 = vld [vmem:[%s2 + $0x48] sm:$0x3]
  %v36 = vld [vmem:[%s0] sm:$0xff]
  %v37 = vld [vmem:[%s0 + $0x8] sm:$0xff]
  %v38 = vld [vmem:[%s0 + $0x10] sm:$0xff]
  %v39 = vld [vmem:[%s0 + $0x18] sm:$0xff]
  %v40 = vld [vmem:[%s0 + $0x20] sm:$0xff]
  %v41 = vld [vmem:[%s0 + $0x28] sm:$0xff]
  %v42 = vld [vmem:[%s0 + $0x30] sm:$0xff]
  %v43 = vld [vmem:[%s0 + $0x38] sm:$0xff]
  %v44 = vld [vmem:[%s0 + $0x40] sm:$0xff]
  %v45 = vld [vmem:[%s0 + $0x48] sm:$0xff]
  %v46 = vld [vmem:[%s0 + $0x50] sm:$0xff]
  %v47 = vld [vmem:[%s0 + $0x58] sm:$0xff]
  %v48 = vld [vmem:[%s0 + $0x60] sm:$0xff]
  %v49 = vld [vmem:[%s0 + $0x68] sm:$0xff]
  %v50 = vld [vmem:[%s0 + $0x70] sm:$0xff]
  %v51 = vld [vmem:[%s0 + $0x78] sm:$0xff]
  %v52 = vld [vmem:[%s0 + $0x80] sm:$0xff]
  %v53 = vld [vmem:[%s0 + $0x88] sm:$0xff]
  %v54 = vld [vmem:[%s0 + $0x90] sm:$0xff]
  %v55 = vld [vmem:[%s0 + $0x98] sm:$0xff]
  %v56 = vld [vmem:[%s0 + $0xa0] sm:$0xff]
  %v57 = vld [vmem:[%s0 + $0xa8] sm:$0xff]
  %v58 = vld [vmem:[%s0 + $0xb0] sm:$0xff]
  %v59 = vld [vmem:[%s0 + $0xb8] sm:$0xff]
  %v60 = vld [vmem:[%s0 + $0xc0] sm:$0xff]
  %v61 = vld [vmem:[%s0 + $0xc8] sm:$0xff]
  %v62 = vld [vmem:[%s0 + $0xd0] sm:$0xff]
  %v63 = vld [vmem:[%s0 + $0xd8] sm:$0xff]
  %v64 = vld [vmem:[%s0 + $0xe0] sm:$0xff]
  %v65 = vld [vmem:[%s0 + $0xe8] sm:$0xff]
  %v66 = vld [vmem:[%s0 + $0xf0] sm:$0xff]
  %v67 = vld [vmem:[%s0 + $0xf8] sm:$0xff]
  %v68 = vld [vmem:[%s0 + $0x100] sm:$0xff]
  %v69 = vld [vmem:[%s0 + $0x108] sm:$0xff]
  %v70 = vld [vmem:[%s0 + $0x110] sm:$0xff]
  %v71 = vld [vmem:[%s0 + $0x118] sm:$0xff]
  %v72 = vld [vmem:[%s0 + $0x120] sm:$0xff]
  %v73 = vld [vmem:[%s0 + $0x128] sm:$0xff]
  %v74 = vld [vmem:[%s0 + $0x130] sm:$0xff]
  %v75 = vld [vmem:[%s0 + $0x138] sm:$0xff]
  %v76 = vld [vmem:[%s0 + $0x140] sm:$0xff]
  %v77 = vld [vmem:[%s0 + $0x148] sm:$0xff]
  %v78 = vld [vmem:[%s0 + $0x150] sm:$0xff]
  %v79 = vld [vmem:[%s0 + $0x158] sm:$0xff]
  %v80 = vld [vmem:[%s0 + $0x160] sm:$0xff]
  %v81 = vld [vmem:[%s0 + $0x168] sm:$0xff]
  %v82 = vld [vmem:[%s0 + $0x170] sm:$0xff]
  %v83 = vld [vmem:[%s0 + $0x178] sm:$0xff]
  %v84 = vld [vmem:[%s0 + $0x180] sm:$0xff]
  %v85 = vld [vmem:[%s0 + $0x188] sm:$0xff]
  %v86 = vld [vmem:[%s0 + $0x190] sm:$0xff]
  %v87 = vld [vmem:[%s0 + $0x198] sm:$0xff]
  %v88 = vld [vmem:[%s0 + $0x1a0] sm:$0xff]
  %v89 = vld [vmem:[%s0 + $0x1a8] sm:$0xff]
  %v90 = vld [vmem:[%s0 + $0x1b0] sm:$0xff]
  %v91 = vld [vmem:[%s0 + $0x1b8] sm:$0xff]
  %v92 = vld [vmem:[%s0 + $0x1c0] sm:$0xff]
  %v93 = vld [vmem:[%s0 + $0x1c8] sm:$0xff]
  %v94 = vld [vmem:[%s0 + $0x1d0] sm:$0xff]
  %v95 = vld [vmem:[%s0 + $0x1d8] sm:$0xff]
  %v96 = vld [vmem:[%s0 + $0x1e0] sm:$0xff]
  %v97 = vld [vmem:[%s0 + $0x1e8] sm:$0xff]
  %v98 = vld [vmem:[%s0 + $0x1f0] sm:$0xff]
  %v99 = vld [vmem:[%s0 + $0x1f8] sm:$0xff]
  %v164 = vunpack.c.l.b16 %v36
  %v165 = vunpack.c.h.b16 %v36
  %v166 = vunpack.c.l.b16 %v37
  %v167 = vunpack.c.h.b16 %v37
  %v168 = vunpack.c.l.b16 %v38
  %v169 = vunpack.c.h.b16 %v38
  %v170 = vunpack.c.l.b16 %v39
  %v171 = vunpack.c.h.b16 %v39
  %v172 = vunpack.c.l.b16 %v40
  %v173 = vunpack.c.h.b16 %v40
  %v174 = vunpack.c.l.b16 %v41
  %v175 = vunpack.c.h.b16 %v41
  %v176 = vunpack.c.l.b16 %v42
  %v177 = vunpack.c.h.b16 %v42
  %v178 = vunpack.c.l.b16 %v43
  %v179 = vunpack.c.h.b16 %v43
  %v180 = vunpack.c.l.b16 %v44
  %v181 = vunpack.c.h.b16 %v44
  %v182 = vunpack.c.l.b16 %v45
  %v183 = vunpack.c.h.b16 %v45
  %v184 = vunpack.c.l.b16 %v46
  %v185 = vunpack.c.h.b16 %v46
  %v186 = vunpack.c.l.b16 %v47
  %v187 = vunpack.c.h.b16 %v47
  %v188 = vunpack.c.l.b16 %v48
  %v189 = vunpack.c.h.b16 %v48
  %v190 = vunpack.c.l.b16 %v49
  %v191 = vunpack.c.h.b16 %v49
  %v192 = vunpack.c.l.b16 %v50
  %v193 = vunpack.c.h.b16 %v50
  %v194 = vunpack.c.l.b16 %v51
  %v195 = vunpack.c.h.b16 %v51
  %v196 = vunpack.c.l.b16 %v52
  %v197 = vunpack.c.h.b16 %v52
  %v198 = vunpack.c.l.b16 %v53
  %v199 = vunpack.c.h.b16 %v53
  %v200 = vunpack.c.l.b16 %v54
  %v201 = vunpack.c.h.b16 %v54
  %v202 = vunpack.c.l.b16 %v55
  %v203 = vunpack.c.h.b16 %v55
  %v204 = vunpack.c.l.b16 %v56
  %v205 = vunpack.c.h.b16 %v56
  %v206 = vunpack.c.l.b16 %v57
  %v207 = vunpack.c.h.b16 %v57
  %v208 = vunpack.c.l.b16 %v58
  %v209 = vunpack.c.h.b16 %v58
  %v210 = vunpack.c.l.b16 %v59
  %v211 = vunpack.c.h.b16 %v59
  %v212 = vunpack.c.l.b16 %v60
  %v213 = vunpack.c.h.b16 %v60
  %v214 = vunpack.c.l.b16 %v61
  %v215 = vunpack.c.h.b16 %v61
  %v216 = vunpack.c.l.b16 %v62
  %v217 = vunpack.c.h.b16 %v62
  %v218 = vunpack.c.l.b16 %v63
  %v219 = vunpack.c.h.b16 %v63
  %v220 = vunpack.c.l.b16 %v64
  %v221 = vunpack.c.h.b16 %v64
  %v222 = vunpack.c.l.b16 %v65
  %v223 = vunpack.c.h.b16 %v65
  %v224 = vunpack.c.l.b16 %v66
  %v225 = vunpack.c.h.b16 %v66
  %v226 = vunpack.c.l.b16 %v67
  %v227 = vunpack.c.h.b16 %v67
  %v228 = vunpack.c.l.b16 %v68
  %v229 = vunpack.c.h.b16 %v68
  %v230 = vunpack.c.l.b16 %v69
  %v231 = vunpack.c.h.b16 %v69
  %v232 = vunpack.c.l.b16 %v70
  %v233 = vunpack.c.h.b16 %v70
  %v234 = vunpack.c.l.b16 %v71
  %v235 = vunpack.c.h.b16 %v71
  %v236 = vunpack.c.l.b16 %v72
  %v237 = vunpack.c.h.b16 %v72
  %v238 = vunpack.c.l.b16 %v73
  %v239 = vunpack.c.h.b16 %v73
  %v240 = vunpack.c.l.b16 %v74
  %v241 = vunpack.c.h.b16 %v74
  %v242 = vunpack.c.l.b16 %v75
  %v243 = vunpack.c.h.b16 %v75
  %v244 = vunpack.c.l.b16 %v76
  %v245 = vunpack.c.h.b16 %v76
  %v246 = vunpack.c.l.b16 %v77
  %v247 = vunpack.c.h.b16 %v77
  %v248 = vunpack.c.l.b16 %v78
  %v249 = vunpack.c.h.b16 %v78
  %v250 = vunpack.c.l.b16 %v79
  %v251 = vunpack.c.h.b16 %v79
  %v252 = vunpack.c.l.b16 %v80
  %v253 = vunpack.c.h.b16 %v80
  %v254 = vunpack.c.l.b16 %v81
  %v255 = vunpack.c.h.b16 %v81
  %v256 = vunpack.c.l.b16 %v82
  %v257 = vunpack.c.h.b16 %v82
  %v258 = vunpack.c.l.b16 %v83
  %v259 = vunpack.c.h.b16 %v83
  %v260 = vunpack.c.l.b16 %v84
  %v261 = vunpack.c.h.b16 %v84
  %v262 = vunpack.c.l.b16 %v85
  %v263 = vunpack.c.h.b16 %v85
  %v264 = vunpack.c.l.b16 %v86
  %v265 = vunpack.c.h.b16 %v86
  %v266 = vunpack.c.l.b16 %v87
  %v267 = vunpack.c.h.b16 %v87
  %v268 = vunpack.c.l.b16 %v88
  %v269 = vunpack.c.h.b16 %v88
  %v270 = vunpack.c.l.b16 %v89
  %v271 = vunpack.c.h.b16 %v89
  %v272 = vunpack.c.l.b16 %v90
  %v273 = vunpack.c.h.b16 %v90
  %v274 = vunpack.c.l.b16 %v91
  %v275 = vunpack.c.h.b16 %v91
  %v276 = vunpack.c.l.b16 %v92
  %v277 = vunpack.c.h.b16 %v92
  %v278 = vunpack.c.l.b16 %v93
  %v279 = vunpack.c.h.b16 %v93
  %v280 = vunpack.c.l.b16 %v94
  %v281 = vunpack.c.h.b16 %v94
  %v282 = vunpack.c.l.b16 %v95
  %v283 = vunpack.c.h.b16 %v95
  %v284 = vunpack.c.l.b16 %v96
  %v285 = vunpack.c.h.b16 %v96
  %v286 = vunpack.c.l.b16 %v97
  %v287 = vunpack.c.h.b16 %v97
  %v288 = vunpack.c.l.b16 %v98
  %v289 = vunpack.c.h.b16 %v98
  %v290 = vunpack.c.l.b16 %v99
  %v291 = vunpack.c.h.b16 %v99
  %v292 = vpack.c.b16 %v166, %v164
  %v293 = vpack.c.b16 %v167, %v165
  %v294 = vpack.c.b16 %v170, %v168
  %v295 = vpack.c.b16 %v171, %v169
  %v296 = vpack.c.b16 %v174, %v172
  %v297 = vpack.c.b16 %v175, %v173
  %v298 = vpack.c.b16 %v178, %v176
  %v299 = vpack.c.b16 %v179, %v177
  %v300 = vpack.c.b16 %v182, %v180
  %v301 = vpack.c.b16 %v183, %v181
  %v302 = vpack.c.b16 %v186, %v184
  %v303 = vpack.c.b16 %v187, %v185
  %v304 = vpack.c.b16 %v190, %v188
  %v305 = vpack.c.b16 %v191, %v189
  %v306 = vpack.c.b16 %v194, %v192
  %v307 = vpack.c.b16 %v195, %v193
  %v308 = vpack.c.b16 %v198, %v196
  %v309 = vpack.c.b16 %v199, %v197
  %v310 = vpack.c.b16 %v202, %v200
  %v311 = vpack.c.b16 %v203, %v201
  %v312 = vpack.c.b16 %v206, %v204
  %v313 = vpack.c.b16 %v207, %v205
  %v314 = vpack.c.b16 %v210, %v208
  %v315 = vpack.c.b16 %v211, %v209
  %v316 = vpack.c.b16 %v214, %v212
  %v317 = vpack.c.b16 %v215, %v213
  %v318 = vpack.c.b16 %v218, %v216
  %v319 = vpack.c.b16 %v219, %v217
  %v320 = vpack.c.b16 %v222, %v220
  %v321 = vpack.c.b16 %v223, %v221
  %v322 = vpack.c.b16 %v226, %v224
  %v323 = vpack.c.b16 %v227, %v225
  %v324 = vpack.c.b16 %v230, %v228
  %v325 = vpack.c.b16 %v231, %v229
  %v326 = vpack.c.b16 %v234, %v232
  %v327 = vpack.c.b16 %v235, %v233
  %v328 = vpack.c.b16 %v238, %v236
  %v329 = vpack.c.b16 %v239, %v237
  %v330 = vpack.c.b16 %v242, %v240
  %v331 = vpack.c.b16 %v243, %v241
  %v332 = vpack.c.b16 %v246, %v244
  %v333 = vpack.c.b16 %v247, %v245
  %v334 = vpack.c.b16 %v250, %v248
  %v335 = vpack.c.b16 %v251, %v249
  %v336 = vpack.c.b16 %v254, %v252
  %v337 = vpack.c.b16 %v255, %v253
  %v338 = vpack.c.b16 %v258, %v256
  %v339 = vpack.c.b16 %v259, %v257
  %v340 = vpack.c.b16 %v262, %v260
  %v341 = vpack.c.b16 %v263, %v261
  %v342 = vpack.c.b16 %v266, %v264
  %v343 = vpack.c.b16 %v267, %v265
  %v344 = vpack.c.b16 %v270, %v268
  %v345 = vpack.c.b16 %v271, %v269
  %v346 = vpack.c.b16 %v274, %v272
  %v347 = vpack.c.b16 %v275, %v273
  %v348 = vpack.c.b16 %v278, %v276
  %v349 = vpack.c.b16 %v279, %v277
  %v350 = vpack.c.b16 %v282, %v280
  %v351 = vpack.c.b16 %v283, %v281
  %v352 = vpack.c.b16 %v286, %v284
  %v353 = vpack.c.b16 %v287, %v285
  %v354 = vpack.c.b16 %v290, %v288
  %v355 = vpack.c.b16 %v291, %v289
  %v407 = vunpack.c.l.b16 %v17
  %v408 = vunpack.c.l.b16 %v18
  %v409 = vunpack.c.l.b16 %v19
  %v410 = vunpack.c.l.b16 %v20
  %v411 = vunpack.c.l.b16 %v21
  %v412 = vunpack.c.l.b16 %v22
  %v413 = vunpack.c.l.b16 %v23
  %v414 = vunpack.c.l.b16 %v24
  %v415 = vunpack.c.l.b16 %v25
  %v416 = vunpack.c.l.b16 %v26
  %v417 = vunpack.c.l.b16 %v27
  %v418 = vunpack.c.l.b16 %v28
  %v419 = vunpack.c.l.b16 %v29
  %v420 = vunpack.c.l.b16 %v30
  %v421 = vunpack.c.l.b16 %v31
  %v422 = vunpack.c.l.b16 %v32
  %v423 = vunpack.c.l.b16 %v33
  %v424 = vunpack.c.l.b16 %v34
  %v425 = vunpack.c.l.b16 %v35
  %v426 = vpack.c.b16 %v408, %v407
  %v427 = vpack.c.b16 %v410, %v409
  %v428 = vpack.c.b16 %v412, %v411
  %v429 = vpack.c.b16 %v414, %v413
  %v430 = vpack.c.b16 %v416, %v415
  %v431 = vpack.c.b16 %v418, %v417
  %v432 = vpack.c.b16 %v420, %v419
  %v433 = vpack.c.b16 %v422, %v421
  %v434 = vpack.c.b16 %v424, %v423
  %v435 = vpack.c.b16 %v425, %v425
  %vm445 = vcmask 154624
  %v447 = vsel %vm445, %v293, 0
  %v450 = vsel %vm445, %v295, 0
  %v453 = vsel %vm445, %v297, 0
  %v456 = vsel %vm445, %v299, 0
  %v459 = vsel %vm445, %v301, 0
  %v462 = vsel %vm445, %v303, 0
  %v465 = vsel %vm445, %v305, 0
  %v468 = vsel %vm445, %v307, 0
  %v471 = vsel %vm445, %v309, 0
  %v474 = vsel %vm445, %v311, 0
  %v477 = vsel %vm445, %v313, 0
  %v480 = vsel %vm445, %v315, 0
  %v483 = vsel %vm445, %v317, 0
  %v486 = vsel %vm445, %v319, 0
  %v489 = vsel %vm445, %v321, 0
  %v492 = vsel %vm445, %v323, 0
  %v495 = vsel %vm445, %v325, 0
  %v498 = vsel %vm445, %v327, 0
  %v501 = vsel %vm445, %v329, 0
  %v504 = vsel %vm445, %v331, 0
  %v507 = vsel %vm445, %v333, 0
  %v510 = vsel %vm445, %v335, 0
  %v513 = vsel %vm445, %v337, 0
  %v516 = vsel %vm445, %v339, 0
  %v519 = vsel %vm445, %v341, 0
  %v522 = vsel %vm445, %v343, 0
  %v525 = vsel %vm445, %v345, 0
  %v528 = vsel %vm445, %v347, 0
  %v531 = vsel %vm445, %v349, 0
  %v534 = vsel %vm445, %v351, 0
  %v537 = vsel %vm445, %v353, 0
  %v540 = vsel %vm445, %v355, 0
  %vm542 = vcmask 1040384
  %vm543 = vcmask 1041408
  %v544 = vsel %vm542, 4294967295, 65535
  %v545 = vsel %vm543, %v544, 0
  %v547 = vand.u32 %v435, %v545
  %549 = vmatprep.subr.bf16.mxu0 0
  %550 = vmatpush1.bf16.msra.mxu0 %v426
  %551 = vmatprep.subr.bf16.mxu0 0
  %552 = vmatpush1.bf16.msra.mxu0 %v427
  %553 = vmatprep.subr.bf16.mxu0 0
  %554 = vmatpush1.bf16.msra.mxu0 %v428
  %555 = vmatprep.subr.bf16.mxu0 0
  %556 = vmatpush1.bf16.msra.mxu0 %v429
  %557 = vmatprep.subr.bf16.mxu0 0
  %558 = vmatpush1.bf16.msra.mxu0 %v430
  %559 = vmatprep.subr.bf16.mxu0 0
  %560 = vmatpush1.bf16.msra.mxu0 %v431
  %561 = vmatprep.subr.bf16.mxu0 0
  %562 = vmatpush1.bf16.msra.mxu0 %v432
  %563 = vmatprep.subr.bf16.mxu0 0
  %564 = vmatpush1.bf16.msra.mxu0 %v433
  %565 = vmatprep.subr.bf16.mxu0 0
  %566 = vmatpush1.bf16.msra.mxu0 %v434
  %567 = vmatprep.subr.bf16.mxu0 0
  %568 = vmatpush1.bf16.msra.mxu0 %v547
  %569 = vmatprep.subr.bf16.mxu0 0
  %570 = vmatpush1.bf16.msra.mxu0 0
  %571 = vmatprep.subr.bf16.mxu0 0
  %572 = vmatpush1.bf16.msra.mxu0 0
  %573 = vmatprep.subr.bf16.mxu0 0
  %574 = vmatpush1.bf16.msra.mxu0 0
  %575 = vmatprep.subr.bf16.mxu0 0
  %576 = vmatpush1.bf16.msra.mxu0 0
  %577 = vmatprep.subr.bf16.mxu0 0
  %578 = vmatpush1.bf16.msra.mxu0 0
  %579 = vmatprep.subr.bf16.mxu0 0
  %580 = vmatpush1.bf16.msra.mxu0 0
  %581 = vmatprep.mubr.bf16.mxu0 %v447
  %582 = vmatmul.mubr.bf16.gmra.mrb[0].mxu0 %v292
  %v583 = vpop.f32.mrb[0].mxu0
  %v584 = vadd.f32 0.0, %v583
  %v585 = vpop.f32.mrb[0].mxu0
  %v586 = vpop.f32.mrb[0].mxu0
  %v587 = vadd.f32 0.0, %v586
  %v588 = vpop.f32.mrb[0].mxu0
  %589 = vmatprep.mubr.bf16.mxu0 %v450
  %590 = vmatmul.mubr.bf16.gmra.mrb[0].mxu0 %v294
  %v591 = vpop.f32.mrb[0].mxu0
  %v592 = vadd.f32 0.0, %v591
  %v593 = vpop.f32.mrb[0].mxu0
  %v594 = vpop.f32.mrb[0].mxu0
  %v595 = vadd.f32 0.0, %v594
  %v596 = vpop.f32.mrb[0].mxu0
  %597 = vmatprep.mubr.bf16.mxu0 %v453
  %598 = vmatmul.mubr.bf16.gmra.mrb[0].mxu0 %v296
  %v599 = vpop.f32.mrb[0].mxu0
  %v600 = vadd.f32 0.0, %v599
  %v601 = vpop.f32.mrb[0].mxu0
  %v602 = vpop.f32.mrb[0].mxu0
  %v603 = vadd.f32 0.0, %v602
  %v604 = vpop.f32.mrb[0].mxu0
  %605 = vmatprep.mubr.bf16.mxu0 %v456
  %606 = vmatmul.mubr.bf16.gmra.mrb[0].mxu0 %v298
  %v607 = vpop.f32.mrb[0].mxu0
  %v608 = vadd.f32 0.0, %v607
  %v609 = vpop.f32.mrb[0].mxu0
  %v610 = vpop.f32.mrb[0].mxu0
  %v611 = vadd.f32 0.0, %v610
  %v612 = vpop.f32.mrb[0].mxu0
  %613 = vmatprep.mubr.bf16.mxu0 %v459
  %614 = vmatmul.mubr.bf16.gmra.mrb[0].mxu0 %v300
  %v615 = vpop.f32.mrb[0].mxu0
  %v616 = vadd.f32 0.0, %v615
  %v617 = vpop.f32.mrb[0].mxu0
  %v618 = vpop.f32.mrb[0].mxu0
  %v619 = vadd.f32 0.0, %v618
  %v620 = vpop.f32.mrb[0].mxu0
  %621 = vmatprep.mubr.bf16.mxu0 %v462
  %622 = vmatmul.mubr.bf16.gmra.mrb[0].mxu0 %v302
  %v623 = vpop.f32.mrb[0].mxu0
  %v624 = vadd.f32 0.0, %v623
  %v625 = vpop.f32.mrb[0].mxu0
  %v626 = vpop.f32.mrb[0].mxu0
  %v627 = vadd.f32 0.0, %v626
  %v628 = vpop.f32.mrb[0].mxu0
  %629 = vmatprep.mubr.bf16.mxu0 %v465
  %630 = vmatmul.mubr.bf16.gmra.mrb[0].mxu0 %v304
  %v631 = vpop.f32.mrb[0].mxu0
  %v632 = vadd.f32 0.0, %v631
  %v633 = vpop.f32.mrb[0].mxu0
  %v634 = vpop.f32.mrb[0].mxu0
  %v635 = vadd.f32 0.0, %v634
  %v636 = vpop.f32.mrb[0].mxu0
  %637 = vmatprep.mubr.bf16.mxu0 %v468
  %638 = vmatmul.mubr.bf16.gmra.mrb[0].mxu0 %v306
  %v639 = vpop.f32.mrb[0].mxu0
  %v640 = vadd.f32 0.0, %v639
  %v641 = vpop.f32.mrb[0].mxu0
  %v642 = vpop.f32.mrb[0].mxu0
  %v643 = vadd.f32 0.0, %v642
  %v644 = vpop.f32.mrb[0].mxu0
  %645 = vmatprep.mubr.bf16.mxu0 %v471
  %646 = vmatmul.mubr.bf16.gmra.mrb[0].mxu0 %v308
  %v647 = vpop.f32.mrb[0].mxu0
  %v648 = vadd.f32 0.0, %v647
  %v649 = vpop.f32.mrb[0].mxu0
  %v650 = vpop.f32.mrb[0].mxu0
  %v651 = vadd.f32 0.0, %v650
  %v652 = vpop.f32.mrb[0].mxu0
  %653 = vmatprep.mubr.bf16.mxu0 %v474
  %654 = vmatmul.mubr.bf16.gmra.mrb[0].mxu0 %v310
  %v655 = vpop.f32.mrb[0].mxu0
  %v656 = vadd.f32 0.0, %v655
  %v657 = vpop.f32.mrb[0].mxu0
  %v658 = vpop.f32.mrb[0].mxu0
  %v659 = vadd.f32 0.0, %v658
  %v660 = vpop.f32.mrb[0].mxu0
  %661 = vmatprep.mubr.bf16.mxu0 %v477
  %662 = vmatmul.mubr.bf16.gmra.mrb[0].mxu0 %v312
  %v663 = vpop.f32.mrb[0].mxu0
  %v664 = vadd.f32 0.0, %v663
  %v665 = vpop.f32.mrb[0].mxu0
  %v666 = vpop.f32.mrb[0].mxu0
  %v667 = vadd.f32 0.0, %v666
  %v668 = vpop.f32.mrb[0].mxu0
  %669 = vmatprep.mubr.bf16.mxu0 %v480
  %670 = vmatmul.mubr.bf16.gmra.mrb[0].mxu0 %v314
  %v671 = vpop.f32.mrb[0].mxu0
  %v672 = vadd.f32 0.0, %v671
  %v673 = vpop.f32.mrb[0].mxu0
  %v674 = vpop.f32.mrb[0].mxu0
  %v675 = vadd.f32 0.0, %v674
  %v676 = vpop.f32.mrb[0].mxu0
  %677 = vmatprep.mubr.bf16.mxu0 %v483
  %678 = vmatmul.mubr.bf16.gmra.mrb[0].mxu0 %v316
  %v679 = vpop.f32.mrb[0].mxu0
  %v680 = vadd.f32 0.0, %v679
  %v681 = vpop.f32.mrb[0].mxu0
  %v682 = vpop.f32.mrb[0].mxu0
  %v683 = vadd.f32 0.0, %v682
  %v684 = vpop.f32.mrb[0].mxu0
  %685 = vmatprep.mubr.bf16.mxu0 %v486
  %686 = vmatmul.mubr.bf16.gmra.mrb[0].mxu0 %v318
  %v687 = vpop.f32.mrb[0].mxu0
  %v688 = vadd.f32 0.0, %v687
  %v689 = vpop.f32.mrb[0].mxu0
  %v690 = vpop.f32.mrb[0].mxu0
  %v691 = vadd.f32 0.0, %v690
  %v692 = vpop.f32.mrb[0].mxu0
  %693 = vmatprep.mubr.bf16.mxu0 %v489
  %694 = vmatmul.mubr.bf16.gmra.mrb[0].mxu0 %v320
  %v695 = vpop.f32.mrb[0].mxu0
  %v696 = vadd.f32 0.0, %v695
  %v697 = vpop.f32.mrb[0].mxu0
  %v698 = vpop.f32.mrb[0].mxu0
  %v699 = vadd.f32 0.0, %v698
  %v700 = vpop.f32.mrb[0].mxu0
  %701 = vmatprep.mubr.bf16.mxu0 %v492
  %702 = vmatmul.mubr.bf16.gmra.mrb[0].mxu0 %v322
  %v703 = vpop.f32.mrb[0].mxu0
  %v704 = vadd.f32 0.0, %v703
  %v705 = vpop.f32.mrb[0].mxu0
  %v706 = vpop.f32.mrb[0].mxu0
  %v707 = vadd.f32 0.0, %v706
  %v708 = vpop.f32.mrb[0].mxu0
  %709 = vmatprep.mubr.bf16.mxu0 %v495
  %710 = vmatmul.mubr.bf16.gmra.mrb[0].mxu0 %v324
  %v711 = vpop.f32.mrb[0].mxu0
  %v712 = vadd.f32 0.0, %v711
  %v713 = vpop.f32.mrb[0].mxu0
  %v714 = vpop.f32.mrb[0].mxu0
  %v715 = vadd.f32 0.0, %v714
  %v716 = vpop.f32.mrb[0].mxu0
  %717 = vmatprep.mubr.bf16.mxu0 %v498
  %718 = vmatmul.mubr.bf16.gmra.mrb[0].mxu0 %v326
  %v719 = vpop.f32.mrb[0].mxu0
  %v720 = vadd.f32 0.0, %v719
  %v721 = vpop.f32.mrb[0].mxu0
  %v722 = vpop.f32.mrb[0].mxu0
  %v723 = vadd.f32 0.0, %v722
  %v724 = vpop.f32.mrb[0].mxu0
  %725 = vmatprep.mubr.bf16.mxu0 %v501
  %726 = vmatmul.mubr.bf16.gmra.mrb[0].mxu0 %v328
  %v727 = vpop.f32.mrb[0].mxu0
  %v728 = vadd.f32 0.0, %v727
  %v729 = vpop.f32.mrb[0].mxu0
  %v730 = vpop.f32.mrb[0].mxu0
  %v731 = vadd.f32 0.0, %v730
  %v732 = vpop.f32.mrb[0].mxu0
  %733 = vmatprep.mubr.bf16.mxu0 %v504
  %734 = vmatmul.mubr.bf16.gmra.mrb[0].mxu0 %v330
  %v735 = vpop.f32.mrb[0].mxu0
  %v736 = vadd.f32 0.0, %v735
  %v737 = vpop.f32.mrb[0].mxu0
  %v738 = vpop.f32.mrb[0].mxu0
  %v739 = vadd.f32 0.0, %v738
  %v740 = vpop.f32.mrb[0].mxu0
  %741 = vmatprep.mubr.bf16.mxu0 %v507
  %742 = vmatmul.mubr.bf16.gmra.mrb[0].mxu0 %v332
  %v743 = vpop.f32.mrb[0].mxu0
  %v744 = vadd.f32 0.0, %v743
  %v745 = vpop.f32.mrb[0].mxu0
  %v746 = vpop.f32.mrb[0].mxu0
  %v747 = vadd.f32 0.0, %v746
  %v748 = vpop.f32.mrb[0].mxu0
  %749 = vmatprep.mubr.bf16.mxu0 %v510
  %750 = vmatmul.mubr.bf16.gmra.mrb[0].mxu0 %v334
  %v751 = vpop.f32.mrb[0].mxu0
  %v752 = vadd.f32 0.0, %v751
  %v753 = vpop.f32.mrb[0].mxu0
  %v754 = vpop.f32.mrb[0].mxu0
  %v755 = vadd.f32 0.0, %v754
  %v756 = vpop.f32.mrb[0].mxu0
  %757 = vmatprep.mubr.bf16.mxu0 %v513
  %758 = vmatmul.mubr.bf16.gmra.mrb[0].mxu0 %v336
  %v759 = vpop.f32.mrb[0].mxu0
  %v760 = vadd.f32 0.0, %v759
  %v761 = vpop.f32.mrb[0].mxu0
  %v762 = vpop.f32.mrb[0].mxu0
  %v763 = vadd.f32 0.0, %v762
  %v764 = vpop.f32.mrb[0].mxu0
  %765 = vmatprep.mubr.bf16.mxu0 %v516
  %766 = vmatmul.mubr.bf16.gmra.mrb[0].mxu0 %v338
  %v767 = vpop.f32.mrb[0].mxu0
  %v768 = vadd.f32 0.0, %v767
  %v769 = vpop.f32.mrb[0].mxu0
  %v770 = vpop.f32.mrb[0].mxu0
  %v771 = vadd.f32 0.0, %v770
  %v772 = vpop.f32.mrb[0].mxu0
  %773 = vmatprep.mubr.bf16.mxu0 %v519
  %774 = vmatmul.mubr.bf16.gmra.mrb[0].mxu0 %v340
  %v775 = vpop.f32.mrb[0].mxu0
  %v776 = vadd.f32 0.0, %v775
  %v777 = vpop.f32.mrb[0].mxu0
  %v778 = vpop.f32.mrb[0].mxu0
  %v779 = vadd.f32 0.0, %v778
  %v780 = vpop.f32.mrb[0].mxu0
  %781 = vmatprep.mubr.bf16.mxu0 %v522
  %782 = vmatmul.mubr.bf16.gmra.mrb[0].mxu0 %v342
  %v783 = vpop.f32.mrb[0].mxu0
  %v784 = vadd.f32 0.0, %v783
  %v785 = vpop.f32.mrb[0].mxu0
  %v786 = vpop.f32.mrb[0].mxu0
  %v787 = vadd.f32 0.0, %v786
  %v788 = vpop.f32.mrb[0].mxu0
  %789 = vmatprep.mubr.bf16.mxu0 %v525
  %790 = vmatmul.mubr.bf16.gmra.mrb[0].mxu0 %v344
  %v791 = vpop.f32.mrb[0].mxu0
  %v792 = vadd.f32 0.0, %v791
  %v793 = vpop.f32.mrb[0].mxu0
  %v794 = vpop.f32.mrb[0].mxu0
  %v795 = vadd.f32 0.0, %v794
  %v796 = vpop.f32.mrb[0].mxu0
  %797 = vmatprep.mubr.bf16.mxu0 %v528
  %798 = vmatmul.mubr.bf16.gmra.mrb[0].mxu0 %v346
  %v799 = vpop.f32.mrb[0].mxu0
  %v800 = vadd.f32 0.0, %v799
  %v801 = vpop.f32.mrb[0].mxu0
  %v802 = vpop.f32.mrb[0].mxu0
  %v803 = vadd.f32 0.0, %v802
  %v804 = vpop.f32.mrb[0].mxu0
  %805 = vmatprep.mubr.bf16.mxu0 %v531
  %806 = vmatmul.mubr.bf16.gmra.mrb[0].mxu0 %v348
  %v807 = vpop.f32.mrb[0].mxu0
  %v808 = vadd.f32 0.0, %v807
  %v809 = vpop.f32.mrb[0].mxu0
  %v810 = vpop.f32.mrb[0].mxu0
  %v811 = vadd.f32 0.0, %v810
  %v812 = vpop.f32.mrb[0].mxu0
  %813 = vmatprep.mubr.bf16.mxu0 %v534
  %814 = vmatmul.mubr.bf16.gmra.mrb[0].mxu0 %v350
  %v815 = vpop.f32.mrb[0].mxu0
  %v816 = vadd.f32 0.0, %v815
  %v817 = vpop.f32.mrb[0].mxu0
  %v818 = vpop.f32.mrb[0].mxu0
  %v819 = vadd.f32 0.0, %v818
  %v820 = vpop.f32.mrb[0].mxu0
  %821 = vmatprep.mubr.bf16.mxu0 %v537
  %822 = vmatmul.mubr.bf16.gmra.mrb[0].mxu0 %v352
  %v823 = vpop.f32.mrb[0].mxu0
  %v824 = vadd.f32 0.0, %v823
  %v825 = vpop.f32.mrb[0].mxu0
  %v826 = vpop.f32.mrb[0].mxu0
  %v827 = vadd.f32 0.0, %v826
  %v828 = vpop.f32.mrb[0].mxu0
  %829 = vmatprep.mubr.bf16.mxu0 %v540
  %830 = vmatmul.mubr.bf16.gmra.mrb[0].mxu0 %v354
  %v831 = vpop.f32.mrb[0].mxu0
  %v832 = vadd.f32 0.0, %v831
  %v833 = vpop.f32.mrb[0].mxu0
  %v834 = vpop.f32.mrb[0].mxu0
  %v835 = vadd.f32 0.0, %v834
  %v836 = vpop.f32.mrb[0].mxu0
  %837 = vdwg.mxu0
  %v838 = vld [vmem:[%s1] sm:$0xff]
  %v839 = vld [vmem:[%s1 + $0x8] sm:$0xff]
  %v840 = vld [vmem:[%s1 + $0x10] sm:$0xff]
  %v841 = vld [vmem:[%s1 + $0x18] sm:$0xff]
  %v842 = vld [vmem:[%s1 + $0x20] sm:$0xff]
  %v843 = vld [vmem:[%s1 + $0x28] sm:$0xff]
  %v844 = vld [vmem:[%s1 + $0x30] sm:$0xff]
  %v845 = vld [vmem:[%s1 + $0x38] sm:$0xff]
  %v846 = vld [vmem:[%s1 + $0x40] sm:$0xff]
  %v847 = vld [vmem:[%s1 + $0x48] sm:$0xff]
  %v848 = vld [vmem:[%s1 + $0x50] sm:$0xff]
  %v849 = vld [vmem:[%s1 + $0x58] sm:$0xff]
  %v850 = vld [vmem:[%s1 + $0x60] sm:$0xff]
  %v851 = vld [vmem:[%s1 + $0x68] sm:$0xff]
  %v852 = vld [vmem:[%s1 + $0x70] sm:$0xff]
  %v853 = vld [vmem:[%s1 + $0x78] sm:$0xff]
  %v854 = vld [vmem:[%s1 + $0x80] sm:$0xff]
  %v855 = vld [vmem:[%s1 + $0x88] sm:$0xff]
  %v856 = vld [vmem:[%s1 + $0x90] sm:$0xff]
  %v857 = vld [vmem:[%s1 + $0x98] sm:$0xff]
  %v858 = vld [vmem:[%s1 + $0xa0] sm:$0xff]
  %v859 = vld [vmem:[%s1 + $0xa8] sm:$0xff]
  %v860 = vld [vmem:[%s1 + $0xb0] sm:$0xff]
  %v861 = vld [vmem:[%s1 + $0xb8] sm:$0xff]
  %v862 = vld [vmem:[%s1 + $0xc0] sm:$0xff]
  %v863 = vld [vmem:[%s1 + $0xc8] sm:$0xff]
  %v864 = vld [vmem:[%s1 + $0xd0] sm:$0xff]
  %v865 = vld [vmem:[%s1 + $0xd8] sm:$0xff]
  %v866 = vld [vmem:[%s1 + $0xe0] sm:$0xff]
  %v867 = vld [vmem:[%s1 + $0xe8] sm:$0xff]
  %v868 = vld [vmem:[%s1 + $0xf0] sm:$0xff]
  %v869 = vld [vmem:[%s1 + $0xf8] sm:$0xff]
  %v870 = vld [vmem:[%s1 + $0x100] sm:$0xff]
  %v871 = vld [vmem:[%s1 + $0x108] sm:$0xff]
  %v872 = vld [vmem:[%s1 + $0x110] sm:$0xff]
  %v873 = vld [vmem:[%s1 + $0x118] sm:$0xff]
  %v874 = vld [vmem:[%s1 + $0x120] sm:$0xff]
  %v875 = vld [vmem:[%s1 + $0x128] sm:$0xff]
  %v876 = vld [vmem:[%s1 + $0x130] sm:$0xff]
  %v877 = vld [vmem:[%s1 + $0x138] sm:$0xff]
  %v878 = vld [vmem:[%s1 + $0x140] sm:$0xff]
  %v879 = vld [vmem:[%s1 + $0x148] sm:$0xff]
  %v880 = vld [vmem:[%s1 + $0x150] sm:$0xff]
  %v881 = vld [vmem:[%s1 + $0x158] sm:$0xff]
  %v882 = vld [vmem:[%s1 + $0x160] sm:$0xff]
  %v883 = vld [vmem:[%s1 + $0x168] sm:$0xff]
  %v884 = vld [vmem:[%s1 + $0x170] sm:$0xff]
  %v885 = vld [vmem:[%s1 + $0x178] sm:$0xff]
  %v886 = vld [vmem:[%s1 + $0x180] sm:$0xff]
  %v887 = vld [vmem:[%s1 + $0x188] sm:$0xff]
  %v888 = vld [vmem:[%s1 + $0x190] sm:$0xff]
  %v889 = vld [vmem:[%s1 + $0x198] sm:$0xff]
  %v890 = vld [vmem:[%s1 + $0x1a0] sm:$0xff]
  %v891 = vld [vmem:[%s1 + $0x1a8] sm:$0xff]
  %v892 = vld [vmem:[%s1 + $0x1b0] sm:$0xff]
  %v893 = vld [vmem:[%s1 + $0x1b8] sm:$0xff]
  %v894 = vld [vmem:[%s1 + $0x1c0] sm:$0xff]
  %v895 = vld [vmem:[%s1 + $0x1c8] sm:$0xff]
  %v896 = vld [vmem:[%s1 + $0x1d0] sm:$0xff]
  %v897 = vld [vmem:[%s1 + $0x1d8] sm:$0xff]
  %v898 = vld [vmem:[%s1 + $0x1e0] sm:$0xff]
  %v899 = vld [vmem:[%s1 + $0x1e8] sm:$0xff]
  %v900 = vld [vmem:[%s1 + $0x1f0] sm:$0xff]
  %v901 = vld [vmem:[%s1 + $0x1f8] sm:$0xff]
  %v966 = vunpack.c.l.b16 %v838
  %v967 = vunpack.c.h.b16 %v838
  %v968 = vunpack.c.l.b16 %v839
  %v969 = vunpack.c.h.b16 %v839
  %v970 = vunpack.c.l.b16 %v840
  %v971 = vunpack.c.h.b16 %v840
  %v972 = vunpack.c.l.b16 %v841
  %v973 = vunpack.c.h.b16 %v841
  %v974 = vunpack.c.l.b16 %v842
  %v975 = vunpack.c.h.b16 %v842
  %v976 = vunpack.c.l.b16 %v843
  %v977 = vunpack.c.h.b16 %v843
  %v978 = vunpack.c.l.b16 %v844
  %v979 = vunpack.c.h.b16 %v844
  %v980 = vunpack.c.l.b16 %v845
  %v981 = vunpack.c.h.b16 %v845
  %v982 = vunpack.c.l.b16 %v846
  %v983 = vunpack.c.h.b16 %v846
  %v984 = vunpack.c.l.b16 %v847
  %v985 = vunpack.c.h.b16 %v847
  %v986 = vunpack.c.l.b16 %v848
  %v987 = vunpack.c.h.b16 %v848
  %v988 = vunpack.c.l.b16 %v849
  %v989 = vunpack.c.h.b16 %v849
  %v990 = vunpack.c.l.b16 %v850
  %v991 = vunpack.c.h.b16 %v850
  %v992 = vunpack.c.l.b16 %v851
  %v993 = vunpack.c.h.b16 %v851
  %v994 = vunpack.c.l.b16 %v852
  %v995 = vunpack.c.h.b16 %v852
  %v996 = vunpack.c.l.b16 %v853
  %v997 = vunpack.c.h.b16 %v853
  %v998 = vunpack.c.l.b16 %v854
  %v999 = vunpack.c.h.b16 %v854
  %v1000 = vunpack.c.l.b16 %v855
  %v1001 = vunpack.c.h.b16 %v855
  %v1002 = vunpack.c.l.b16 %v856
  %v1003 = vunpack.c.h.b16 %v856
  %v1004 = vunpack.c.l.b16 %v857
  %v1005 = vunpack.c.h.b16 %v857
  %v1006 = vunpack.c.l.b16 %v858
  %v1007 = vunpack.c.h.b16 %v858
  %v1008 = vunpack.c.l.b16 %v859
  %v1009 = vunpack.c.h.b16 %v859
  %v1010 = vunpack.c.l.b16 %v860
  %v1011 = vunpack.c.h.b16 %v860
  %v1012 = vunpack.c.l.b16 %v861
  %v1013 = vunpack.c.h.b16 %v861
  %v1014 = vunpack.c.l.b16 %v862
  %v1015 = vunpack.c.h.b16 %v862
  %v1016 = vunpack.c.l.b16 %v863
  %v1017 = vunpack.c.h.b16 %v863
  %v1018 = vunpack.c.l.b16 %v864
  %v1019 = vunpack.c.h.b16 %v864
  %v1020 = vunpack.c.l.b16 %v865
  %v1021 = vunpack.c.h.b16 %v865
  %v1022 = vunpack.c.l.b16 %v866
  %v1023 = vunpack.c.h.b16 %v866
  %v1024 = vunpack.c.l.b16 %v867
  %v1025 = vunpack.c.h.b16 %v867
  %v1026 = vunpack.c.l.b16 %v868
  %v1027 = vunpack.c.h.b16 %v868
  %v1028 = vunpack.c.l.b16 %v869
  %v1029 = vunpack.c.h.b16 %v869
  %v1030 = vunpack.c.l.b16 %v870
  %v1031 = vunpack.c.h.b16 %v870
  %v1032 = vunpack.c.l.b16 %v871
  %v1033 = vunpack.c.h.b16 %v871
  %v1034 = vunpack.c.l.b16 %v872
  %v1035 = vunpack.c.h.b16 %v872
  %v1036 = vunpack.c.l.b16 %v873
  %v1037 = vunpack.c.h.b16 %v873
  %v1038 = vunpack.c.l.b16 %v874
  %v1039 = vunpack.c.h.b16 %v874
  %v1040 = vunpack.c.l.b16 %v875
  %v1041 = vunpack.c.h.b16 %v875
  %v1042 = vunpack.c.l.b16 %v876
  %v1043 = vunpack.c.h.b16 %v876
  %v1044 = vunpack.c.l.b16 %v877
  %v1045 = vunpack.c.h.b16 %v877
  %v1046 = vunpack.c.l.b16 %v878
  %v1047 = vunpack.c.h.b16 %v878
  %v1048 = vunpack.c.l.b16 %v879
  %v1049 = vunpack.c.h.b16 %v879
  %v1050 = vunpack.c.l.b16 %v880
  %v1051 = vunpack.c.h.b16 %v880
  %v1052 = vunpack.c.l.b16 %v881
  %v1053 = vunpack.c.h.b16 %v881
  %v1054 = vunpack.c.l.b16 %v882
  %v1055 = vunpack.c.h.b16 %v882
  %v1056 = vunpack.c.l.b16 %v883
  %v1057 = vunpack.c.h.b16 %v883
  %v1058 = vunpack.c.l.b16 %v884
  %v1059 = vunpack.c.h.b16 %v884
  %v1060 = vunpack.c.l.b16 %v885
  %v1061 = vunpack.c.h.b16 %v885
  %v1062 = vunpack.c.l.b16 %v886
  %v1063 = vunpack.c.h.b16 %v886
  %v1064 = vunpack.c.l.b16 %v887
  %v1065 = vunpack.c.h.b16 %v887
  %v1066 = vunpack.c.l.b16 %v888
  %v1067 = vunpack.c.h.b16 %v888
  %v1068 = vunpack.c.l.b16 %v889
  %v1069 = vunpack.c.h.b16 %v889
  %v1070 = vunpack.c.l.b16 %v890
  %v1071 = vunpack.c.h.b16 %v890
  %v1072 = vunpack.c.l.b16 %v891
  %v1073 = vunpack.c.h.b16 %v891
  %v1074 = vunpack.c.l.b16 %v892
  %v1075 = vunpack.c.h.b16 %v892
  %v1076 = vunpack.c.l.b16 %v893
  %v1077 = vunpack.c.h.b16 %v893
  %v1078 = vunpack.c.l.b16 %v894
  %v1079 = vunpack.c.h.b16 %v894
  %v1080 = vunpack.c.l.b16 %v895
  %v1081 = vunpack.c.h.b16 %v895
  %v1082 = vunpack.c.l.b16 %v896
  %v1083 = vunpack.c.h.b16 %v896
  %v1084 = vunpack.c.l.b16 %v897
  %v1085 = vunpack.c.h.b16 %v897
  %v1086 = vunpack.c.l.b16 %v898
  %v1087 = vunpack.c.h.b16 %v898
  %v1088 = vunpack.c.l.b16 %v899
  %v1089 = vunpack.c.h.b16 %v899
  %v1090 = vunpack.c.l.b16 %v900
  %v1091 = vunpack.c.h.b16 %v900
  %v1092 = vunpack.c.l.b16 %v901
  %v1093 = vunpack.c.h.b16 %v901
  %v1094 = vpack.c.b16 %v968, %v966
  %v1095 = vpack.c.b16 %v969, %v967
  %v1096 = vpack.c.b16 %v972, %v970
  %v1097 = vpack.c.b16 %v973, %v971
  %v1098 = vpack.c.b16 %v976, %v974
  %v1099 = vpack.c.b16 %v977, %v975
  %v1100 = vpack.c.b16 %v980, %v978
  %v1101 = vpack.c.b16 %v981, %v979
  %v1102 = vpack.c.b16 %v984, %v982
  %v1103 = vpack.c.b16 %v985, %v983
  %v1104 = vpack.c.b16 %v988, %v986
  %v1105 = vpack.c.b16 %v989, %v987
  %v1106 = vpack.c.b16 %v992, %v990
  %v1107 = vpack.c.b16 %v993, %v991
  %v1108 = vpack.c.b16 %v996, %v994
  %v1109 = vpack.c.b16 %v997, %v995
  %v1110 = vpack.c.b16 %v1000, %v998
  %v1111 = vpack.c.b16 %v1001, %v999
  %v1112 = vpack.c.b16 %v1004, %v1002
  %v1113 = vpack.c.b16 %v1005, %v1003
  %v1114 = vpack.c.b16 %v1008, %v1006
  %v1115 = vpack.c.b16 %v1009, %v1007
  %v1116 = vpack.c.b16 %v1012, %v1010
  %v1117 = vpack.c.b16 %v1013, %v1011
  %v1118 = vpack.c.b16 %v1016, %v1014
  %v1119 = vpack.c.b16 %v1017, %v1015
  %v1120 = vpack.c.b16 %v1020, %v1018
  %v1121 = vpack.c.b16 %v1021, %v1019
  %v1122 = vpack.c.b16 %v1024, %v1022
  %v1123 = vpack.c.b16 %v1025, %v1023
  %v1124 = vpack.c.b16 %v1028, %v1026
  %v1125 = vpack.c.b16 %v1029, %v1027
  %v1126 = vpack.c.b16 %v1032, %v1030
  %v1127 = vpack.c.b16 %v1033, %v1031
  %v1128 = vpack.c.b16 %v1036, %v1034
  %v1129 = vpack.c.b16 %v1037, %v1035
  %v1130 = vpack.c.b16 %v1040, %v1038
  %v1131 = vpack.c.b16 %v1041, %v1039
  %v1132 = vpack.c.b16 %v1044, %v1042
  %v1133 = vpack.c.b16 %v1045, %v1043
  %v1134 = vpack.c.b16 %v1048, %v1046
  %v1135 = vpack.c.b16 %v1049, %v1047
  %v1136 = vpack.c.b16 %v1052, %v1050
  %v1137 = vpack.c.b16 %v1053, %v1051
  %v1138 = vpack.c.b16 %v1056, %v1054
  %v1139 = vpack.c.b16 %v1057, %v1055
  %v1140 = vpack.c.b16 %v1060, %v1058
  %v1141 = vpack.c.b16 %v1061, %v1059
  %v1142 = vpack.c.b16 %v1064, %v1062
  %v1143 = vpack.c.b16 %v1065, %v1063
  %v1144 = vpack.c.b16 %v1068, %v1066
  %v1145 = vpack.c.b16 %v1069, %v1067
  %v1146 = vpack.c.b16 %v1072, %v1070
  %v1147 = vpack.c.b16 %v1073, %v1071
  %v1148 = vpack.c.b16 %v1076, %v1074
  %v1149 = vpack.c.b16 %v1077, %v1075
  %v1150 = vpack.c.b16 %v1080, %v1078
  %v1151 = vpack.c.b16 %v1081, %v1079
  %v1152 = vpack.c.b16 %v1084, %v1082
  %v1153 = vpack.c.b16 %v1085, %v1083
  %v1154 = vpack.c.b16 %v1088, %v1086
  %v1155 = vpack.c.b16 %v1089, %v1087
  %v1156 = vpack.c.b16 %v1092, %v1090
  %v1157 = vpack.c.b16 %v1093, %v1091
  %v1191 = vsel %vm445, %v1095, 0
  %v1194 = vsel %vm445, %v1097, 0
  %v1197 = vsel %vm445, %v1099, 0
  %v1200 = vsel %vm445, %v1101, 0
  %v1203 = vsel %vm445, %v1103, 0
  %v1206 = vsel %vm445, %v1105, 0
  %v1209 = vsel %vm445, %v1107, 0
  %v1212 = vsel %vm445, %v1109, 0
  %v1215 = vsel %vm445, %v1111, 0
  %v1218 = vsel %vm445, %v1113, 0
  %v1221 = vsel %vm445, %v1115, 0
  %v1224 = vsel %vm445, %v1117, 0
  %v1227 = vsel %vm445, %v1119, 0
  %v1230 = vsel %vm445, %v1121, 0
  %v1233 = vsel %vm445, %v1123, 0
  %v1236 = vsel %vm445, %v1125, 0
  %v1239 = vsel %vm445, %v1127, 0
  %v1242 = vsel %vm445, %v1129, 0
  %v1245 = vsel %vm445, %v1131, 0
  %v1248 = vsel %vm445, %v1133, 0
  %v1251 = vsel %vm445, %v1135, 0
  %v1254 = vsel %vm445, %v1137, 0
  %v1257 = vsel %vm445, %v1139, 0
  %v1260 = vsel %vm445, %v1141, 0
  %v1263 = vsel %vm445, %v1143, 0
  %v1266 = vsel %vm445, %v1145, 0
  %v1269 = vsel %vm445, %v1147, 0
  %v1272 = vsel %vm445, %v1149, 0
  %v1275 = vsel %vm445, %v1151, 0
  %v1278 = vsel %vm445, %v1153, 0
  %v1281 = vsel %vm445, %v1155, 0
  %v1284 = vsel %vm445, %v1157, 0
  %1286 = vmatprep.subr.bf16.mxu0 0
  %1287 = vmatpush1.bf16.msra.mxu0 %v426
  %1288 = vmatprep.subr.bf16.mxu0 0
  %1289 = vmatpush1.bf16.msra.mxu0 %v427
  %1290 = vmatprep.subr.bf16.mxu0 0
  %1291 = vmatpush1.bf16.msra.mxu0 %v428
  %1292 = vmatprep.subr.bf16.mxu0 0
  %1293 = vmatpush1.bf16.msra.mxu0 %v429
  %1294 = vmatprep.subr.bf16.mxu0 0
  %1295 = vmatpush1.bf16.msra.mxu0 %v430
  %1296 = vmatprep.subr.bf16.mxu0 0
  %1297 = vmatpush1.bf16.msra.mxu0 %v431
  %1298 = vmatprep.subr.bf16.mxu0 0
  %1299 = vmatpush1.bf16.msra.mxu0 %v432
  %1300 = vmatprep.subr.bf16.mxu0 0
  %1301 = vmatpush1.bf16.msra.mxu0 %v433
  %1302 = vmatprep.subr.bf16.mxu0 0
  %1303 = vmatpush1.bf16.msra.mxu0 %v434
  %1304 = vmatprep.subr.bf16.mxu0 0
  %1305 = vmatpush1.bf16.msra.mxu0 %v547
  %1306 = vmatprep.subr.bf16.mxu0 0
  %1307 = vmatpush1.bf16.msra.mxu0 0
  %1308 = vmatprep.subr.bf16.mxu0 0
  %1309 = vmatpush1.bf16.msra.mxu0 0
  %1310 = vmatprep.subr.bf16.mxu0 0
  %1311 = vmatpush1.bf16.msra.mxu0 0
  %1312 = vmatprep.subr.bf16.mxu0 0
  %1313 = vmatpush1.bf16.msra.mxu0 0
  %1314 = vmatprep.subr.bf16.mxu0 0
  %1315 = vmatpush1.bf16.msra.mxu0 0
  %1316 = vmatprep.subr.bf16.mxu0 0
  %1317 = vmatpush1.bf16.msra.mxu0 0
  %1318 = vmatprep.mubr.bf16.mxu0 %v1191
  %1319 = vmatmul.mubr.bf16.gmra.mrb[0].mxu0 %v1094
  %v1320 = vpop.f32.mrb[0].mxu0
  %v1321 = vadd.f32 0.0, %v1320
  %v1322 = vpop.f32.mrb[0].mxu0
  %v1323 = vpop.f32.mrb[0].mxu0
  %v1324 = vadd.f32 0.0, %v1323
  %v1325 = vpop.f32.mrb[0].mxu0
  %1326 = vmatprep.mubr.bf16.mxu0 %v1194
  %1327 = vmatmul.mubr.bf16.gmra.mrb[0].mxu0 %v1096
  %v1328 = vpop.f32.mrb[0].mxu0
  %v1329 = vadd.f32 0.0, %v1328
  %v1330 = vpop.f32.mrb[0].mxu0
  %v1331 = vpop.f32.mrb[0].mxu0
  %v1332 = vadd.f32 0.0, %v1331
  %v1333 = vpop.f32.mrb[0].mxu0
  %1334 = vmatprep.mubr.bf16.mxu0 %v1197
  %1335 = vmatmul.mubr.bf16.gmra.mrb[0].mxu0 %v1098
  %v1336 = vpop.f32.mrb[0].mxu0
  %v1337 = vadd.f32 0.0, %v1336
  %v1338 = vpop.f32.mrb[0].mxu0
  %v1339 = vpop.f32.mrb[0].mxu0
  %v1340 = vadd.f32 0.0, %v1339
  %v1341 = vpop.f32.mrb[0].mxu0
  %1342 = vmatprep.mubr.bf16.mxu0 %v1200
  %1343 = vmatmul.mubr.bf16.gmra.mrb[0].mxu0 %v1100
  %v1344 = vpop.f32.mrb[0].mxu0
  %v1345 = vadd.f32 0.0, %v1344
  %v1346 = vpop.f32.mrb[0].mxu0
  %v1347 = vpop.f32.mrb[0].mxu0
  %v1348 = vadd.f32 0.0, %v1347
  %v1349 = vpop.f32.mrb[0].mxu0
  %1350 = vmatprep.mubr.bf16.mxu0 %v1203
  %1351 = vmatmul.mubr.bf16.gmra.mrb[0].mxu0 %v1102
  %v1352 = vpop.f32.mrb[0].mxu0
  %v1353 = vadd.f32 0.0, %v1352
  %v1354 = vpop.f32.mrb[0].mxu0
  %v1355 = vpop.f32.mrb[0].mxu0
  %v1356 = vadd.f32 0.0, %v1355
  %v1357 = vpop.f32.mrb[0].mxu0
  %1358 = vmatprep.mubr.bf16.mxu0 %v1206
  %1359 = vmatmul.mubr.bf16.gmra.mrb[0].mxu0 %v1104
  %v1360 = vpop.f32.mrb[0].mxu0
  %v1361 = vadd.f32 0.0, %v1360
  %v1362 = vpop.f32.mrb[0].mxu0
  %v1363 = vpop.f32.mrb[0].mxu0
  %v1364 = vadd.f32 0.0, %v1363
  %v1365 = vpop.f32.mrb[0].mxu0
  %1366 = vmatprep.mubr.bf16.mxu0 %v1209
  %1367 = vmatmul.mubr.bf16.gmra.mrb[0].mxu0 %v1106
  %v1368 = vpop.f32.mrb[0].mxu0
  %v1369 = vadd.f32 0.0, %v1368
  %v1370 = vpop.f32.mrb[0].mxu0
  %v1371 = vpop.f32.mrb[0].mxu0
  %v1372 = vadd.f32 0.0, %v1371
  %v1373 = vpop.f32.mrb[0].mxu0
  %1374 = vmatprep.mubr.bf16.mxu0 %v1212
  %1375 = vmatmul.mubr.bf16.gmra.mrb[0].mxu0 %v1108
  %v1376 = vpop.f32.mrb[0].mxu0
  %v1377 = vadd.f32 0.0, %v1376
  %v1378 = vpop.f32.mrb[0].mxu0
  %v1379 = vpop.f32.mrb[0].mxu0
  %v1380 = vadd.f32 0.0, %v1379
  %v1381 = vpop.f32.mrb[0].mxu0
  %1382 = vmatprep.mubr.bf16.mxu0 %v1215
  %1383 = vmatmul.mubr.bf16.gmra.mrb[0].mxu0 %v1110
  %v1384 = vpop.f32.mrb[0].mxu0
  %v1385 = vadd.f32 0.0, %v1384
  %v1386 = vpop.f32.mrb[0].mxu0
  %v1387 = vpop.f32.mrb[0].mxu0
  %v1388 = vadd.f32 0.0, %v1387
  %v1389 = vpop.f32.mrb[0].mxu0
  %1390 = vmatprep.mubr.bf16.mxu0 %v1218
  %1391 = vmatmul.mubr.bf16.gmra.mrb[0].mxu0 %v1112
  %v1392 = vpop.f32.mrb[0].mxu0
  %v1393 = vadd.f32 0.0, %v1392
  %v1394 = vpop.f32.mrb[0].mxu0
  %v1395 = vpop.f32.mrb[0].mxu0
  %v1396 = vadd.f32 0.0, %v1395
  %v1397 = vpop.f32.mrb[0].mxu0
  %1398 = vmatprep.mubr.bf16.mxu0 %v1221
  %1399 = vmatmul.mubr.bf16.gmra.mrb[0].mxu0 %v1114
  %v1400 = vpop.f32.mrb[0].mxu0
  %v1401 = vadd.f32 0.0, %v1400
  %v1402 = vpop.f32.mrb[0].mxu0
  %v1403 = vpop.f32.mrb[0].mxu0
  %v1404 = vadd.f32 0.0, %v1403
  %v1405 = vpop.f32.mrb[0].mxu0
  %1406 = vmatprep.mubr.bf16.mxu0 %v1224
  %1407 = vmatmul.mubr.bf16.gmra.mrb[0].mxu0 %v1116
  %v1408 = vpop.f32.mrb[0].mxu0
  %v1409 = vadd.f32 0.0, %v1408
  %v1410 = vpop.f32.mrb[0].mxu0
  %v1411 = vpop.f32.mrb[0].mxu0
  %v1412 = vadd.f32 0.0, %v1411
  %v1413 = vpop.f32.mrb[0].mxu0
  %1414 = vmatprep.mubr.bf16.mxu0 %v1227
  %1415 = vmatmul.mubr.bf16.gmra.mrb[0].mxu0 %v1118
  %v1416 = vpop.f32.mrb[0].mxu0
  %v1417 = vadd.f32 0.0, %v1416
  %v1418 = vpop.f32.mrb[0].mxu0
  %v1419 = vpop.f32.mrb[0].mxu0
  %v1420 = vadd.f32 0.0, %v1419
  %v1421 = vpop.f32.mrb[0].mxu0
  %1422 = vmatprep.mubr.bf16.mxu0 %v1230
  %1423 = vmatmul.mubr.bf16.gmra.mrb[0].mxu0 %v1120
  %v1424 = vpop.f32.mrb[0].mxu0
  %v1425 = vadd.f32 0.0, %v1424
  %v1426 = vpop.f32.mrb[0].mxu0
  %v1427 = vpop.f32.mrb[0].mxu0
  %v1428 = vadd.f32 0.0, %v1427
  %v1429 = vpop.f32.mrb[0].mxu0
  %1430 = vmatprep.mubr.bf16.mxu0 %v1233
  %1431 = vmatmul.mubr.bf16.gmra.mrb[0].mxu0 %v1122
  %v1432 = vpop.f32.mrb[0].mxu0
  %v1433 = vadd.f32 0.0, %v1432
  %v1434 = vpop.f32.mrb[0].mxu0
  %v1435 = vpop.f32.mrb[0].mxu0
  %v1436 = vadd.f32 0.0, %v1435
  %v1437 = vpop.f32.mrb[0].mxu0
  %1438 = vmatprep.mubr.bf16.mxu0 %v1236
  %1439 = vmatmul.mubr.bf16.gmra.mrb[0].mxu0 %v1124
  %v1440 = vpop.f32.mrb[0].mxu0
  %v1441 = vadd.f32 0.0, %v1440
  %v1442 = vpop.f32.mrb[0].mxu0
  %v1443 = vpop.f32.mrb[0].mxu0
  %v1444 = vadd.f32 0.0, %v1443
  %v1445 = vpop.f32.mrb[0].mxu0
  %1446 = vmatprep.mubr.bf16.mxu0 %v1239
  %1447 = vmatmul.mubr.bf16.gmra.mrb[0].mxu0 %v1126
  %v1448 = vpop.f32.mrb[0].mxu0
  %v1449 = vadd.f32 0.0, %v1448
  %v1450 = vpop.f32.mrb[0].mxu0
  %v1451 = vpop.f32.mrb[0].mxu0
  %v1452 = vadd.f32 0.0, %v1451
  %v1453 = vpop.f32.mrb[0].mxu0
  %1454 = vmatprep.mubr.bf16.mxu0 %v1242
  %1455 = vmatmul.mubr.bf16.gmra.mrb[0].mxu0 %v1128
  %v1456 = vpop.f32.mrb[0].mxu0
  %v1457 = vadd.f32 0.0, %v1456
  %v1458 = vpop.f32.mrb[0].mxu0
  %v1459 = vpop.f32.mrb[0].mxu0
  %v1460 = vadd.f32 0.0, %v1459
  %v1461 = vpop.f32.mrb[0].mxu0
  %1462 = vmatprep.mubr.bf16.mxu0 %v1245
  %1463 = vmatmul.mubr.bf16.gmra.mrb[0].mxu0 %v1130
  %v1464 = vpop.f32.mrb[0].mxu0
  %v1465 = vadd.f32 0.0, %v1464
  %v1466 = vpop.f32.mrb[0].mxu0
  %v1467 = vpop.f32.mrb[0].mxu0
  %v1468 = vadd.f32 0.0, %v1467
  %v1469 = vpop.f32.mrb[0].mxu0
  %1470 = vmatprep.mubr.bf16.mxu0 %v1248
  %1471 = vmatmul.mubr.bf16.gmra.mrb[0].mxu0 %v1132
  %v1472 = vpop.f32.mrb[0].mxu0
  %v1473 = vadd.f32 0.0, %v1472
  %v1474 = vpop.f32.mrb[0].mxu0
  %v1475 = vpop.f32.mrb[0].mxu0
  %v1476 = vadd.f32 0.0, %v1475
  %v1477 = vpop.f32.mrb[0].mxu0
  %1478 = vmatprep.mubr.bf16.mxu0 %v1251
  %1479 = vmatmul.mubr.bf16.gmra.mrb[0].mxu0 %v1134
  %v1480 = vpop.f32.mrb[0].mxu0
  %v1481 = vadd.f32 0.0, %v1480
  %v1482 = vpop.f32.mrb[0].mxu0
  %v1483 = vpop.f32.mrb[0].mxu0
  %v1484 = vadd.f32 0.0, %v1483
  %v1485 = vpop.f32.mrb[0].mxu0
  %1486 = vmatprep.mubr.bf16.mxu0 %v1254
  %1487 = vmatmul.mubr.bf16.gmra.mrb[0].mxu0 %v1136
  %v1488 = vpop.f32.mrb[0].mxu0
  %v1489 = vadd.f32 0.0, %v1488
  %v1490 = vpop.f32.mrb[0].mxu0
  %v1491 = vpop.f32.mrb[0].mxu0
  %v1492 = vadd.f32 0.0, %v1491
  %v1493 = vpop.f32.mrb[0].mxu0
  %1494 = vmatprep.mubr.bf16.mxu0 %v1257
  %1495 = vmatmul.mubr.bf16.gmra.mrb[0].mxu0 %v1138
  %v1496 = vpop.f32.mrb[0].mxu0
  %v1497 = vadd.f32 0.0, %v1496
  %v1498 = vpop.f32.mrb[0].mxu0
  %v1499 = vpop.f32.mrb[0].mxu0
  %v1500 = vadd.f32 0.0, %v1499
  %v1501 = vpop.f32.mrb[0].mxu0
  %1502 = vmatprep.mubr.bf16.mxu0 %v1260
  %1503 = vmatmul.mubr.bf16.gmra.mrb[0].mxu0 %v1140
  %v1504 = vpop.f32.mrb[0].mxu0
  %v1505 = vadd.f32 0.0, %v1504
  %v1506 = vpop.f32.mrb[0].mxu0
  %v1507 = vpop.f32.mrb[0].mxu0
  %v1508 = vadd.f32 0.0, %v1507
  %v1509 = vpop.f32.mrb[0].mxu0
  %1510 = vmatprep.mubr.bf16.mxu0 %v1263
  %1511 = vmatmul.mubr.bf16.gmra.mrb[0].mxu0 %v1142
  %v1512 = vpop.f32.mrb[0].mxu0
  %v1513 = vadd.f32 0.0, %v1512
  %v1514 = vpop.f32.mrb[0].mxu0
  %v1515 = vpop.f32.mrb[0].mxu0
  %v1516 = vadd.f32 0.0, %v1515
  %v1517 = vpop.f32.mrb[0].mxu0
  %1518 = vmatprep.mubr.bf16.mxu0 %v1266
  %1519 = vmatmul.mubr.bf16.gmra.mrb[0].mxu0 %v1144
  %v1520 = vpop.f32.mrb[0].mxu0
  %v1521 = vadd.f32 0.0, %v1520
  %v1522 = vpop.f32.mrb[0].mxu0
  %v1523 = vpop.f32.mrb[0].mxu0
  %v1524 = vadd.f32 0.0, %v1523
  %v1525 = vpop.f32.mrb[0].mxu0
  %1526 = vmatprep.mubr.bf16.mxu0 %v1269
  %1527 = vmatmul.mubr.bf16.gmra.mrb[0].mxu0 %v1146
  %v1528 = vpop.f32.mrb[0].mxu0
  %v1529 = vadd.f32 0.0, %v1528
  %v1530 = vpop.f32.mrb[0].mxu0
  %v1531 = vpop.f32.mrb[0].mxu0
  %v1532 = vadd.f32 0.0, %v1531
  %v1533 = vpop.f32.mrb[0].mxu0
  %1534 = vmatprep.mubr.bf16.mxu0 %v1272
  %1535 = vmatmul.mubr.bf16.gmra.mrb[0].mxu0 %v1148
  %v1536 = vpop.f32.mrb[0].mxu0
  %v1537 = vadd.f32 0.0, %v1536
  %v1538 = vpop.f32.mrb[0].mxu0
  %v1539 = vpop.f32.mrb[0].mxu0
  %v1540 = vadd.f32 0.0, %v1539
  %v1541 = vpop.f32.mrb[0].mxu0
  %1542 = vmatprep.mubr.bf16.mxu0 %v1275
  %1543 = vmatmul.mubr.bf16.gmra.mrb[0].mxu0 %v1150
  %v1544 = vpop.f32.mrb[0].mxu0
  %v1545 = vadd.f32 0.0, %v1544
  %v1546 = vpop.f32.mrb[0].mxu0
  %v1547 = vpop.f32.mrb[0].mxu0
  %v1548 = vadd.f32 0.0, %v1547
  %v1549 = vpop.f32.mrb[0].mxu0
  %1550 = vmatprep.mubr.bf16.mxu0 %v1278
  %1551 = vmatmul.mubr.bf16.gmra.mrb[0].mxu0 %v1152
  %v1552 = vpop.f32.mrb[0].mxu0
  %v1553 = vadd.f32 0.0, %v1552
  %v1554 = vpop.f32.mrb[0].mxu0
  %v1555 = vpop.f32.mrb[0].mxu0
  %v1556 = vadd.f32 0.0, %v1555
  %v1557 = vpop.f32.mrb[0].mxu0
  %1558 = vmatprep.mubr.bf16.mxu0 %v1281
  %1559 = vmatmul.mubr.bf16.gmra.mrb[0].mxu0 %v1154
  %v1560 = vpop.f32.mrb[0].mxu0
  %v1561 = vadd.f32 0.0, %v1560
  %v1562 = vpop.f32.mrb[0].mxu0
  %v1563 = vpop.f32.mrb[0].mxu0
  %v1564 = vadd.f32 0.0, %v1563
  %v1565 = vpop.f32.mrb[0].mxu0
  %1566 = vmatprep.mubr.bf16.mxu0 %v1284
  %1567 = vmatmul.mubr.bf16.gmra.mrb[0].mxu0 %v1156
  %v1568 = vpop.f32.mrb[0].mxu0
  %v1569 = vadd.f32 0.0, %v1568
  %v1570 = vpop.f32.mrb[0].mxu0
  %v1571 = vpop.f32.mrb[0].mxu0
  %v1572 = vadd.f32 0.0, %v1571
  %v1573 = vpop.f32.mrb[0].mxu0
  %1574 = vdwg.mxu0
  %1639 = vrot.lane.b32.xlu0 %v1321, 64
  %v1640 = vpop.permute.xlu0 %1639
  %1641 = vrot.lane.b32.xlu0 %v1324, 64
  %v1642 = vpop.permute.xlu0 %1641
  %1643 = vrot.lane.b32.xlu0 %v1329, 64
  %v1644 = vpop.permute.xlu0 %1643
  %1645 = vrot.lane.b32.xlu0 %v1332, 64
  %v1646 = vpop.permute.xlu0 %1645
  %1647 = vrot.lane.b32.xlu0 %v1337, 64
  %v1648 = vpop.permute.xlu0 %1647
  %1649 = vrot.lane.b32.xlu0 %v1340, 64
  %v1650 = vpop.permute.xlu0 %1649
  %1651 = vrot.lane.b32.xlu0 %v1345, 64
  %v1652 = vpop.permute.xlu0 %1651
  %1653 = vrot.lane.b32.xlu0 %v1348, 64
  %v1654 = vpop.permute.xlu0 %1653
  %1655 = vrot.lane.b32.xlu0 %v1353, 64
  %v1656 = vpop.permute.xlu0 %1655
  %1657 = vrot.lane.b32.xlu0 %v1356, 64
  %v1658 = vpop.permute.xlu0 %1657
  %1659 = vrot.lane.b32.xlu0 %v1361, 64
  %v1660 = vpop.permute.xlu0 %1659
  %1661 = vrot.lane.b32.xlu0 %v1364, 64
  %v1662 = vpop.permute.xlu0 %1661
  %1663 = vrot.lane.b32.xlu0 %v1369, 64
  %v1664 = vpop.permute.xlu0 %1663
  %1665 = vrot.lane.b32.xlu0 %v1372, 64
  %v1666 = vpop.permute.xlu0 %1665
  %1667 = vrot.lane.b32.xlu0 %v1377, 64
  %v1668 = vpop.permute.xlu0 %1667
  %1669 = vrot.lane.b32.xlu0 %v1380, 64
  %v1670 = vpop.permute.xlu0 %1669
  %1671 = vrot.lane.b32.xlu0 %v1385, 64
  %v1672 = vpop.permute.xlu0 %1671
  %1673 = vrot.lane.b32.xlu0 %v1388, 64
  %v1674 = vpop.permute.xlu0 %1673
  %1675 = vrot.lane.b32.xlu0 %v1393, 64
  %v1676 = vpop.permute.xlu0 %1675
  %1677 = vrot.lane.b32.xlu0 %v1396, 64
  %v1678 = vpop.permute.xlu0 %1677
  %1679 = vrot.lane.b32.xlu0 %v1401, 64
  %v1680 = vpop.permute.xlu0 %1679
  %1681 = vrot.lane.b32.xlu0 %v1404, 64
  %v1682 = vpop.permute.xlu0 %1681
  %1683 = vrot.lane.b32.xlu0 %v1409, 64
  %v1684 = vpop.permute.xlu0 %1683
  %1685 = vrot.lane.b32.xlu0 %v1412, 64
  %v1686 = vpop.permute.xlu0 %1685
  %1687 = vrot.lane.b32.xlu0 %v1417, 64
  %v1688 = vpop.permute.xlu0 %1687
  %1689 = vrot.lane.b32.xlu0 %v1420, 64
  %v1690 = vpop.permute.xlu0 %1689
  %1691 = vrot.lane.b32.xlu0 %v1425, 64
  %v1692 = vpop.permute.xlu0 %1691
  %1693 = vrot.lane.b32.xlu0 %v1428, 64
  %v1694 = vpop.permute.xlu0 %1693
  %1695 = vrot.lane.b32.xlu0 %v1433, 64
  %v1696 = vpop.permute.xlu0 %1695
  %1697 = vrot.lane.b32.xlu0 %v1436, 64
  %v1698 = vpop.permute.xlu0 %1697
  %1699 = vrot.lane.b32.xlu0 %v1441, 64
  %v1700 = vpop.permute.xlu0 %1699
  %1701 = vrot.lane.b32.xlu0 %v1444, 64
  %v1702 = vpop.permute.xlu0 %1701
  %1703 = vrot.lane.b32.xlu0 %v1449, 64
  %v1704 = vpop.permute.xlu0 %1703
  %1705 = vrot.lane.b32.xlu0 %v1452, 64
  %v1706 = vpop.permute.xlu0 %1705
  %1707 = vrot.lane.b32.xlu0 %v1457, 64
  %v1708 = vpop.permute.xlu0 %1707
  %1709 = vrot.lane.b32.xlu0 %v1460, 64
  %v1710 = vpop.permute.xlu0 %1709
  %1711 = vrot.lane.b32.xlu0 %v1465, 64
  %v1712 = vpop.permute.xlu0 %1711
  %1713 = vrot.lane.b32.xlu0 %v1468, 64
  %v1714 = vpop.permute.xlu0 %1713
  %1715 = vrot.lane.b32.xlu0 %v1473, 64
  %v1716 = vpop.permute.xlu0 %1715
  %1717 = vrot.lane.b32.xlu0 %v1476, 64
  %v1718 = vpop.permute.xlu0 %1717
  %1719 = vrot.lane.b32.xlu0 %v1481, 64
  %v1720 = vpop.permute.xlu0 %1719
  %1721 = vrot.lane.b32.xlu0 %v1484, 64
  %v1722 = vpop.permute.xlu0 %1721
  %1723 = vrot.lane.b32.xlu0 %v1489, 64
  %v1724 = vpop.permute.xlu0 %1723
  %1725 = vrot.lane.b32.xlu0 %v1492, 64
  %v1726 = vpop.permute.xlu0 %1725
  %1727 = vrot.lane.b32.xlu0 %v1497, 64
  %v1728 = vpop.permute.xlu0 %1727
  %1729 = vrot.lane.b32.xlu0 %v1500, 64
  %v1730 = vpop.permute.xlu0 %1729
  %1731 = vrot.lane.b32.xlu0 %v1505, 64
  %v1732 = vpop.permute.xlu0 %1731
  %1733 = vrot.lane.b32.xlu0 %v1508, 64
  %v1734 = vpop.permute.xlu0 %1733
  %1735 = vrot.lane.b32.xlu0 %v1513, 64
  %v1736 = vpop.permute.xlu0 %1735
  %1737 = vrot.lane.b32.xlu0 %v1516, 64
  %v1738 = vpop.permute.xlu0 %1737
  %1739 = vrot.lane.b32.xlu0 %v1521, 64
  %v1740 = vpop.permute.xlu0 %1739
  %1741 = vrot.lane.b32.xlu0 %v1524, 64
  %v1742 = vpop.permute.xlu0 %1741
  %1743 = vrot.lane.b32.xlu0 %v1529, 64
  %v1744 = vpop.permute.xlu0 %1743
  %1745 = vrot.lane.b32.xlu0 %v1532, 64
  %v1746 = vpop.permute.xlu0 %1745
  %1747 = vrot.lane.b32.xlu0 %v1537, 64
  %v1748 = vpop.permute.xlu0 %1747
  %1749 = vrot.lane.b32.xlu0 %v1540, 64
  %v1750 = vpop.permute.xlu0 %1749
  %1751 = vrot.lane.b32.xlu0 %v1545, 64
  %v1752 = vpop.permute.xlu0 %1751
  %1753 = vrot.lane.b32.xlu0 %v1548, 64
  %v1754 = vpop.permute.xlu0 %1753
  %1755 = vrot.lane.b32.xlu0 %v1553, 64
  %v1756 = vpop.permute.xlu0 %1755
  %1757 = vrot.lane.b32.xlu0 %v1556, 64
  %v1758 = vpop.permute.xlu0 %1757
  %1759 = vrot.lane.b32.xlu0 %v1561, 64
  %v1760 = vpop.permute.xlu0 %1759
  %1761 = vrot.lane.b32.xlu0 %v1564, 64
  %v1762 = vpop.permute.xlu0 %1761
  %1763 = vrot.lane.b32.xlu0 %v1569, 64
  %v1764 = vpop.permute.xlu0 %1763
  %1765 = vrot.lane.b32.xlu0 %v1572, 64
  %v1766 = vpop.permute.xlu0 %1765
  %vm1831 = vcmask 523264
  %v1832 = vsel %vm1831, %v584, %v1640
  %v1833 = vsel %vm1831, %v587, %v1642
  %v1834 = vsel %vm1831, %v592, %v1644
  %v1835 = vsel %vm1831, %v595, %v1646
  %v1836 = vsel %vm1831, %v600, %v1648
  %v1837 = vsel %vm1831, %v603, %v1650
  %v1838 = vsel %vm1831, %v608, %v1652
  %v1839 = vsel %vm1831, %v611, %v1654
  %v1840 = vsel %vm1831, %v616, %v1656
  %v1841 = vsel %vm1831, %v619, %v1658
  %v1842 = vsel %vm1831, %v624, %v1660
  %v1843 = vsel %vm1831, %v627, %v1662
  %v1844 = vsel %vm1831, %v632, %v1664
  %v1845 = vsel %vm1831, %v635, %v1666
  %v1846 = vsel %vm1831, %v640, %v1668
  %v1847 = vsel %vm1831, %v643, %v1670
  %v1848 = vsel %vm1831, %v648, %v1672
  %v1849 = vsel %vm1831, %v651, %v1674
  %v1850 = vsel %vm1831, %v656, %v1676
  %v1851 = vsel %vm1831, %v659, %v1678
  %v1852 = vsel %vm1831, %v664, %v1680
  %v1853 = vsel %vm1831, %v667, %v1682
  %v1854 = vsel %vm1831, %v672, %v1684
  %v1855 = vsel %vm1831, %v675, %v1686
  %v1856 = vsel %vm1831, %v680, %v1688
  %v1857 = vsel %vm1831, %v683, %v1690
  %v1858 = vsel %vm1831, %v688, %v1692
  %v1859 = vsel %vm1831, %v691, %v1694
  %v1860 = vsel %vm1831, %v696, %v1696
  %v1861 = vsel %vm1831, %v699, %v1698
  %v1862 = vsel %vm1831, %v704, %v1700
  %v1863 = vsel %vm1831, %v707, %v1702
  %v1864 = vsel %vm1831, %v712, %v1704
  %v1865 = vsel %vm1831, %v715, %v1706
  %v1866 = vsel %vm1831, %v720, %v1708
  %v1867 = vsel %vm1831, %v723, %v1710
  %v1868 = vsel %vm1831, %v728, %v1712
  %v1869 = vsel %vm1831, %v731, %v1714
  %v1870 = vsel %vm1831, %v736, %v1716
  %v1871 = vsel %vm1831, %v739, %v1718
  %v1872 = vsel %vm1831, %v744, %v1720
  %v1873 = vsel %vm1831, %v747, %v1722
  %v1874 = vsel %vm1831, %v752, %v1724
  %v1875 = vsel %vm1831, %v755, %v1726
  %v1876 = vsel %vm1831, %v760, %v1728
  %v1877 = vsel %vm1831, %v763, %v1730
  %v1878 = vsel %vm1831, %v768, %v1732
  %v1879 = vsel %vm1831, %v771, %v1734
  %v1880 = vsel %vm1831, %v776, %v1736
  %v1881 = vsel %vm1831, %v779, %v1738
  %v1882 = vsel %vm1831, %v784, %v1740
  %v1883 = vsel %vm1831, %v787, %v1742
  %v1884 = vsel %vm1831, %v792, %v1744
  %v1885 = vsel %vm1831, %v795, %v1746
  %v1886 = vsel %vm1831, %v800, %v1748
  %v1887 = vsel %vm1831, %v803, %v1750
  %v1888 = vsel %vm1831, %v808, %v1752
  %v1889 = vsel %vm1831, %v811, %v1754
  %v1890 = vsel %vm1831, %v816, %v1756
  %v1891 = vsel %vm1831, %v819, %v1758
  %v1892 = vsel %vm1831, %v824, %v1760
  %v1893 = vsel %vm1831, %v827, %v1762
  %v1894 = vsel %vm1831, %v832, %v1764
  %v1895 = vsel %vm1831, %v835, %v1766
  %v1896 = vpack.c.bf16 %v1833, %v1832
  %v1897 = vpack.c.bf16 %v1835, %v1834
  %v1898 = vpack.c.bf16 %v1837, %v1836
  %v1899 = vpack.c.bf16 %v1839, %v1838
  %v1900 = vpack.c.bf16 %v1841, %v1840
  %v1901 = vpack.c.bf16 %v1843, %v1842
  %v1902 = vpack.c.bf16 %v1845, %v1844
  %v1903 = vpack.c.bf16 %v1847, %v1846
  %v1904 = vpack.c.bf16 %v1849, %v1848
  %v1905 = vpack.c.bf16 %v1851, %v1850
  %v1906 = vpack.c.bf16 %v1853, %v1852
  %v1907 = vpack.c.bf16 %v1855, %v1854
  %v1908 = vpack.c.bf16 %v1857, %v1856
  %v1909 = vpack.c.bf16 %v1859, %v1858
  %v1910 = vpack.c.bf16 %v1861, %v1860
  %v1911 = vpack.c.bf16 %v1863, %v1862
  %v1912 = vpack.c.bf16 %v1865, %v1864
  %v1913 = vpack.c.bf16 %v1867, %v1866
  %v1914 = vpack.c.bf16 %v1869, %v1868
  %v1915 = vpack.c.bf16 %v1871, %v1870
  %v1916 = vpack.c.bf16 %v1873, %v1872
  %v1917 = vpack.c.bf16 %v1875, %v1874
  %v1918 = vpack.c.bf16 %v1877, %v1876
  %v1919 = vpack.c.bf16 %v1879, %v1878
  %v1920 = vpack.c.bf16 %v1881, %v1880
  %v1921 = vpack.c.bf16 %v1883, %v1882
  %v1922 = vpack.c.bf16 %v1885, %v1884
  %v1923 = vpack.c.bf16 %v1887, %v1886
  %v1924 = vpack.c.bf16 %v1889, %v1888
  %v1925 = vpack.c.bf16 %v1891, %v1890
  %v1926 = vpack.c.bf16 %v1893, %v1892
  %v1927 = vpack.c.bf16 %v1895, %v1894
  %v1960 = vunpack.c.l.b16 %v1896
  %v1961 = vunpack.c.h.b16 %v1896
  %v1962 = vunpack.c.l.b16 %v1897
  %v1963 = vunpack.c.h.b16 %v1897
  %v1964 = vunpack.c.l.b16 %v1898
  %v1965 = vunpack.c.h.b16 %v1898
  %v1966 = vunpack.c.l.b16 %v1899
  %v1967 = vunpack.c.h.b16 %v1899
  %v1968 = vunpack.c.l.b16 %v1900
  %v1969 = vunpack.c.h.b16 %v1900
  %v1970 = vunpack.c.l.b16 %v1901
  %v1971 = vunpack.c.h.b16 %v1901
  %v1972 = vunpack.c.l.b16 %v1902
  %v1973 = vunpack.c.h.b16 %v1902
  %v1974 = vunpack.c.l.b16 %v1903
  %v1975 = vunpack.c.h.b16 %v1903
  %v1976 = vunpack.c.l.b16 %v1904
  %v1977 = vunpack.c.h.b16 %v1904
  %v1978 = vunpack.c.l.b16 %v1905
  %v1979 = vunpack.c.h.b16 %v1905
  %v1980 = vunpack.c.l.b16 %v1906
  %v1981 = vunpack.c.h.b16 %v1906
  %v1982 = vunpack.c.l.b16 %v1907
  %v1983 = vunpack.c.h.b16 %v1907
  %v1984 = vunpack.c.l.b16 %v1908
  %v1985 = vunpack.c.h.b16 %v1908
  %v1986 = vunpack.c.l.b16 %v1909
  %v1987 = vunpack.c.h.b16 %v1909
  %v1988 = vunpack.c.l.b16 %v1910
  %v1989 = vunpack.c.h.b16 %v1910
  %v1990 = vunpack.c.l.b16 %v1911
  %v1991 = vunpack.c.h.b16 %v1911
  %v1992 = vunpack.c.l.b16 %v1912
  %v1993 = vunpack.c.h.b16 %v1912
  %v1994 = vunpack.c.l.b16 %v1913
  %v1995 = vunpack.c.h.b16 %v1913
  %v1996 = vunpack.c.l.b16 %v1914
  %v1997 = vunpack.c.h.b16 %v1914
  %v1998 = vunpack.c.l.b16 %v1915
  %v1999 = vunpack.c.h.b16 %v1915
  %v2000 = vunpack.c.l.b16 %v1916
  %v2001 = vunpack.c.h.b16 %v1916
  %v2002 = vunpack.c.l.b16 %v1917
  %v2003 = vunpack.c.h.b16 %v1917
  %v2004 = vunpack.c.l.b16 %v1918
  %v2005 = vunpack.c.h.b16 %v1918
  %v2006 = vunpack.c.l.b16 %v1919
  %v2007 = vunpack.c.h.b16 %v1919
  %v2008 = vunpack.c.l.b16 %v1920
  %v2009 = vunpack.c.h.b16 %v1920
  %v2010 = vunpack.c.l.b16 %v1921
  %v2011 = vunpack.c.h.b16 %v1921
  %v2012 = vunpack.c.l.b16 %v1922
  %v2013 = vunpack.c.h.b16 %v1922
  %v2014 = vunpack.c.l.b16 %v1923
  %v2015 = vunpack.c.h.b16 %v1923
  %v2016 = vunpack.c.l.b16 %v1924
  %v2017 = vunpack.c.h.b16 %v1924
  %v2018 = vunpack.c.l.b16 %v1925
  %v2019 = vunpack.c.h.b16 %v1925
  %v2020 = vunpack.c.l.b16 %v1926
  %v2021 = vunpack.c.h.b16 %v1926
  %v2022 = vunpack.c.l.b16 %v1927
  %v2023 = vunpack.c.h.b16 %v1927
  %v2024 = vpack.c.b16 %v1960, %v1960
  %v2025 = vpack.c.b16 %v1961, %v1961
  %v2026 = vpack.c.b16 %v1962, %v1962
  %v2027 = vpack.c.b16 %v1963, %v1963
  %v2028 = vpack.c.b16 %v1964, %v1964
  %v2029 = vpack.c.b16 %v1965, %v1965
  %v2030 = vpack.c.b16 %v1966, %v1966
  %v2031 = vpack.c.b16 %v1967, %v1967
  %v2032 = vpack.c.b16 %v1968, %v1968
  %v2033 = vpack.c.b16 %v1969, %v1969
  %v2034 = vpack.c.b16 %v1970, %v1970
  %v2035 = vpack.c.b16 %v1971, %v1971
  %v2036 = vpack.c.b16 %v1972, %v1972
  %v2037 = vpack.c.b16 %v1973, %v1973
  %v2038 = vpack.c.b16 %v1974, %v1974
  %v2039 = vpack.c.b16 %v1975, %v1975
  %v2040 = vpack.c.b16 %v1976, %v1976
  %v2041 = vpack.c.b16 %v1977, %v1977
  %v2042 = vpack.c.b16 %v1978, %v1978
  %v2043 = vpack.c.b16 %v1979, %v1979
  %v2044 = vpack.c.b16 %v1980, %v1980
  %v2045 = vpack.c.b16 %v1981, %v1981
  %v2046 = vpack.c.b16 %v1982, %v1982
  %v2047 = vpack.c.b16 %v1983, %v1983
  %v2048 = vpack.c.b16 %v1984, %v1984
  %v2049 = vpack.c.b16 %v1985, %v1985
  %v2050 = vpack.c.b16 %v1986, %v1986
  %v2051 = vpack.c.b16 %v1987, %v1987
  %v2052 = vpack.c.b16 %v1988, %v1988
  %v2053 = vpack.c.b16 %v1989, %v1989
  %v2054 = vpack.c.b16 %v1990, %v1990
  %v2055 = vpack.c.b16 %v1991, %v1991
  %v2056 = vpack.c.b16 %v1992, %v1992
  %v2057 = vpack.c.b16 %v1993, %v1993
  %v2058 = vpack.c.b16 %v1994, %v1994
  %v2059 = vpack.c.b16 %v1995, %v1995
  %v2060 = vpack.c.b16 %v1996, %v1996
  %v2061 = vpack.c.b16 %v1997, %v1997
  %v2062 = vpack.c.b16 %v1998, %v1998
  %v2063 = vpack.c.b16 %v1999, %v1999
  %v2064 = vpack.c.b16 %v2000, %v2000
  %v2065 = vpack.c.b16 %v2001, %v2001
  %v2066 = vpack.c.b16 %v2002, %v2002
  %v2067 = vpack.c.b16 %v2003, %v2003
  %v2068 = vpack.c.b16 %v2004, %v2004
  %v2069 = vpack.c.b16 %v2005, %v2005
  %v2070 = vpack.c.b16 %v2006, %v2006
  %v2071 = vpack.c.b16 %v2007, %v2007
  %v2072 = vpack.c.b16 %v2008, %v2008
  %v2073 = vpack.c.b16 %v2009, %v2009
  %v2074 = vpack.c.b16 %v2010, %v2010
  %v2075 = vpack.c.b16 %v2011, %v2011
  %v2076 = vpack.c.b16 %v2012, %v2012
  %v2077 = vpack.c.b16 %v2013, %v2013
  %v2078 = vpack.c.b16 %v2014, %v2014
  %v2079 = vpack.c.b16 %v2015, %v2015
  %v2080 = vpack.c.b16 %v2016, %v2016
  %v2081 = vpack.c.b16 %v2017, %v2017
  %v2082 = vpack.c.b16 %v2018, %v2018
  %v2083 = vpack.c.b16 %v2019, %v2019
  %v2084 = vpack.c.b16 %v2020, %v2020
  %v2085 = vpack.c.b16 %v2021, %v2021
  %v2086 = vpack.c.b16 %v2022, %v2022
  %v2087 = vpack.c.b16 %v2023, %v2023
  %2152 = vst [vmem:[%s3] sm:$0xf] %v2024
  %2153 = vst [vmem:[%s3 + $0x4] sm:$0xf] %v2025
  %2154 = vst [vmem:[%s3 + $0x8] sm:$0xf] %v2026
  %2155 = vst [vmem:[%s3 + $0xc] sm:$0xf] %v2027
  %2156 = vst [vmem:[%s3 + $0x10] sm:$0xf] %v2028
  %2157 = vst [vmem:[%s3 + $0x14] sm:$0xf] %v2029
  %2158 = vst [vmem:[%s3 + $0x18] sm:$0xf] %v2030
  %2159 = vst [vmem:[%s3 + $0x1c] sm:$0xf] %v2031
  %2160 = vst [vmem:[%s3 + $0x20] sm:$0xf] %v2032
  %2161 = vst [vmem:[%s3 + $0x24] sm:$0xf] %v2033
  %2162 = vst [vmem:[%s3 + $0x28] sm:$0xf] %v2034
  %2163 = vst [vmem:[%s3 + $0x2c] sm:$0xf] %v2035
  %2164 = vst [vmem:[%s3 + $0x30] sm:$0xf] %v2036
  %2165 = vst [vmem:[%s3 + $0x34] sm:$0xf] %v2037
  %2166 = vst [vmem:[%s3 + $0x38] sm:$0xf] %v2038
  %2167 = vst [vmem:[%s3 + $0x3c] sm:$0xf] %v2039
  %2168 = vst [vmem:[%s3 + $0x40] sm:$0xf] %v2040
  %2169 = vst [vmem:[%s3 + $0x44] sm:$0xf] %v2041
  %2170 = vst [vmem:[%s3 + $0x48] sm:$0xf] %v2042
  %2171 = vst [vmem:[%s3 + $0x4c] sm:$0xf] %v2043
  %2172 = vst [vmem:[%s3 + $0x50] sm:$0xf] %v2044
  %2173 = vst [vmem:[%s3 + $0x54] sm:$0xf] %v2045
  %2174 = vst [vmem:[%s3 + $0x58] sm:$0xf] %v2046
  %2175 = vst [vmem:[%s3 + $0x5c] sm:$0xf] %v2047
  %2176 = vst [vmem:[%s3 + $0x60] sm:$0xf] %v2048
  %2177 = vst [vmem:[%s3 + $0x64] sm:$0xf] %v2049
  %2178 = vst [vmem:[%s3 + $0x68] sm:$0xf] %v2050
  %2179 = vst [vmem:[%s3 + $0x6c] sm:$0xf] %v2051
  %2180 = vst [vmem:[%s3 + $0x70] sm:$0xf] %v2052
  %2181 = vst [vmem:[%s3 + $0x74] sm:$0xf] %v2053
  %2182 = vst [vmem:[%s3 + $0x78] sm:$0xf] %v2054
  %2183 = vst [vmem:[%s3 + $0x7c] sm:$0xf] %v2055
  %2184 = vst [vmem:[%s3 + $0x80] sm:$0xf] %v2056
  %2185 = vst [vmem:[%s3 + $0x84] sm:$0xf] %v2057
  %2186 = vst [vmem:[%s3 + $0x88] sm:$0xf] %v2058
  %2187 = vst [vmem:[%s3 + $0x8c] sm:$0xf] %v2059
  %2188 = vst [vmem:[%s3 + $0x90] sm:$0xf] %v2060
  %2189 = vst [vmem:[%s3 + $0x94] sm:$0xf] %v2061
  %2190 = vst [vmem:[%s3 + $0x98] sm:$0xf] %v2062
  %2191 = vst [vmem:[%s3 + $0x9c] sm:$0xf] %v2063
  %2192 = vst [vmem:[%s3 + $0xa0] sm:$0xf] %v2064
  %2193 = vst [vmem:[%s3 + $0xa4] sm:$0xf] %v2065
  %2194 = vst [vmem:[%s3 + $0xa8] sm:$0xf] %v2066
  %2195 = vst [vmem:[%s3 + $0xac] sm:$0xf] %v2067
  %2196 = vst [vmem:[%s3 + $0xb0] sm:$0xf] %v2068
  %2197 = vst [vmem:[%s3 + $0xb4] sm:$0xf] %v2069
  %2198 = vst [vmem:[%s3 + $0xb8] sm:$0xf] %v2070
  %2199 = vst [vmem:[%s3 + $0xbc] sm:$0xf] %v2071
  %2200 = vst [vmem:[%s3 + $0xc0] sm:$0xf] %v2072
  %2201 = vst [vmem:[%s3 + $0xc4] sm:$0xf] %v2073
  %2202 = vst [vmem:[%s3 + $0xc8] sm:$0xf] %v2074
  %2203 = vst [vmem:[%s3 + $0xcc] sm:$0xf] %v2075
  %2204 = vst [vmem:[%s3 + $0xd0] sm:$0xf] %v2076
  %2205 = vst [vmem:[%s3 + $0xd4] sm:$0xf] %v2077
  %2206 = vst [vmem:[%s3 + $0xd8] sm:$0xf] %v2078
  %2207 = vst [vmem:[%s3 + $0xdc] sm:$0xf] %v2079
  %2208 = vst [vmem:[%s3 + $0xe0] sm:$0xf] %v2080
  %2209 = vst [vmem:[%s3 + $0xe4] sm:$0xf] %v2081
  %2210 = vst [vmem:[%s3 + $0xe8] sm:$0xf] %v2082
  %2211 = vst [vmem:[%s3 + $0xec] sm:$0xf] %v2083
  %2212 = vst [vmem:[%s3 + $0xf0] sm:$0xf] %v2084
  %2213 = vst [vmem:[%s3 + $0xf4] sm:$0xf] %v2085
  %2214 = vst [vmem:[%s3 + $0xf8] sm:$0xf] %v2086
  %2215 = vst [vmem:[%s3 + $0xfc] sm:$0xf] %v2087
  %v2216 = vadd.f32 %v1832, %v1833
  %v2217 = vadd.f32 %v2216, %v1834
  %v2218 = vadd.f32 %v2217, %v1835
  %v2219 = vadd.f32 %v2218, %v1836
  %v2220 = vadd.f32 %v2219, %v1837
  %v2221 = vadd.f32 %v2220, %v1838
  %v2222 = vadd.f32 %v2221, %v1839
  %v2223 = vadd.f32 %v2222, %v1840
  %v2224 = vadd.f32 %v2223, %v1841
  %v2225 = vadd.f32 %v2224, %v1842
  %v2226 = vadd.f32 %v2225, %v1843
  %v2227 = vadd.f32 %v2226, %v1844
  %v2228 = vadd.f32 %v2227, %v1845
  %v2229 = vadd.f32 %v2228, %v1846
  %v2230 = vadd.f32 %v2229, %v1847
  %v2231 = vadd.f32 %v2230, %v1848
  %v2232 = vadd.f32 %v2231, %v1849
  %v2233 = vadd.f32 %v2232, %v1850
  %v2234 = vadd.f32 %v2233, %v1851
  %v2235 = vadd.f32 %v2234, %v1852
  %v2236 = vadd.f32 %v2235, %v1853
  %v2237 = vadd.f32 %v2236, %v1854
  %v2238 = vadd.f32 %v2237, %v1855
  %v2239 = vadd.f32 %v2238, %v1856
  %v2240 = vadd.f32 %v2239, %v1857
  %v2241 = vadd.f32 %v2240, %v1858
  %v2242 = vadd.f32 %v2241, %v1859
  %v2243 = vadd.f32 %v2242, %v1860
  %v2244 = vadd.f32 %v2243, %v1861
  %v2245 = vadd.f32 %v2244, %v1862
  %v2246 = vadd.f32 %v2245, %v1863
  %v2247 = vadd.f32 %v2246, %v1864
  %v2248 = vadd.f32 %v2247, %v1865
  %v2249 = vadd.f32 %v2248, %v1866
  %v2250 = vadd.f32 %v2249, %v1867
  %v2251 = vadd.f32 %v2250, %v1868
  %v2252 = vadd.f32 %v2251, %v1869
  %v2253 = vadd.f32 %v2252, %v1870
  %v2254 = vadd.f32 %v2253, %v1871
  %v2255 = vadd.f32 %v2254, %v1872
  %v2256 = vadd.f32 %v2255, %v1873
  %v2257 = vadd.f32 %v2256, %v1874
  %v2258 = vadd.f32 %v2257, %v1875
  %v2259 = vadd.f32 %v2258, %v1876
  %v2260 = vadd.f32 %v2259, %v1877
  %v2261 = vadd.f32 %v2260, %v1878
  %v2262 = vadd.f32 %v2261, %v1879
  %v2263 = vadd.f32 %v2262, %v1880
  %v2264 = vadd.f32 %v2263, %v1881
  %v2265 = vadd.f32 %v2264, %v1882
  %v2266 = vadd.f32 %v2265, %v1883
  %v2267 = vadd.f32 %v2266, %v1884
  %v2268 = vadd.f32 %v2267, %v1885
  %v2269 = vadd.f32 %v2268, %v1886
  %v2270 = vadd.f32 %v2269, %v1887
  %v2271 = vadd.f32 %v2270, %v1888
  %v2272 = vadd.f32 %v2271, %v1889
  %v2273 = vadd.f32 %v2272, %v1890
  %v2274 = vadd.f32 %v2273, %v1891
  %v2275 = vadd.f32 %v2274, %v1892
  %v2276 = vadd.f32 %v2275, %v1893
  %v2277 = vadd.f32 %v2276, %v1894
  %v2278 = vadd.f32 %v2277, %v1895
  %v2279 = vrot.slane %v2278, 4
  %v2280 = vadd.f32 %v2278, %v2279
  %v2281 = vrot.slane %v2280, 2
  %v2282 = vadd.f32 %v2280, %v2281
  %v2283 = vrot.slane %v2282, 1
  %v2284 = vadd.f32 %v2282, %v2283
  %v2285 = vmul.f32 %v1832, %v1832
  %v2286 = vmul.f32 %v1833, %v1833
  %v2287 = vmul.f32 %v1834, %v1834
  %v2288 = vmul.f32 %v1835, %v1835
  %v2289 = vmul.f32 %v1836, %v1836
  %v2290 = vmul.f32 %v1837, %v1837
  %v2291 = vmul.f32 %v1838, %v1838
  %v2292 = vmul.f32 %v1839, %v1839
  %v2293 = vmul.f32 %v1840, %v1840
  %v2294 = vmul.f32 %v1841, %v1841
  %v2295 = vmul.f32 %v1842, %v1842
  %v2296 = vmul.f32 %v1843, %v1843
  %v2297 = vmul.f32 %v1844, %v1844
  %v2298 = vmul.f32 %v1845, %v1845
  %v2299 = vmul.f32 %v1846, %v1846
  %v2300 = vmul.f32 %v1847, %v1847
  %v2301 = vmul.f32 %v1848, %v1848
  %v2302 = vmul.f32 %v1849, %v1849
  %v2303 = vmul.f32 %v1850, %v1850
  %v2304 = vmul.f32 %v1851, %v1851
  %v2305 = vmul.f32 %v1852, %v1852
  %v2306 = vmul.f32 %v1853, %v1853
  %v2307 = vmul.f32 %v1854, %v1854
  %v2308 = vmul.f32 %v1855, %v1855
  %v2309 = vmul.f32 %v1856, %v1856
  %v2310 = vmul.f32 %v1857, %v1857
  %v2311 = vmul.f32 %v1858, %v1858
  %v2312 = vmul.f32 %v1859, %v1859
  %v2313 = vmul.f32 %v1860, %v1860
  %v2314 = vmul.f32 %v1861, %v1861
  %v2315 = vmul.f32 %v1862, %v1862
  %v2316 = vmul.f32 %v1863, %v1863
  %v2317 = vmul.f32 %v1864, %v1864
  %v2318 = vmul.f32 %v1865, %v1865
  %v2319 = vmul.f32 %v1866, %v1866
  %v2320 = vmul.f32 %v1867, %v1867
  %v2321 = vmul.f32 %v1868, %v1868
  %v2322 = vmul.f32 %v1869, %v1869
  %v2323 = vmul.f32 %v1870, %v1870
  %v2324 = vmul.f32 %v1871, %v1871
  %v2325 = vmul.f32 %v1872, %v1872
  %v2326 = vmul.f32 %v1873, %v1873
  %v2327 = vmul.f32 %v1874, %v1874
  %v2328 = vmul.f32 %v1875, %v1875
  %v2329 = vmul.f32 %v1876, %v1876
  %v2330 = vmul.f32 %v1877, %v1877
  %v2331 = vmul.f32 %v1878, %v1878
  %v2332 = vmul.f32 %v1879, %v1879
  %v2333 = vmul.f32 %v1880, %v1880
  %v2334 = vmul.f32 %v1881, %v1881
  %v2335 = vmul.f32 %v1882, %v1882
  %v2336 = vmul.f32 %v1883, %v1883
  %v2337 = vmul.f32 %v1884, %v1884
  %v2338 = vmul.f32 %v1885, %v1885
  %v2339 = vmul.f32 %v1886, %v1886
  %v2340 = vmul.f32 %v1887, %v1887
  %v2341 = vmul.f32 %v1888, %v1888
  %v2342 = vmul.f32 %v1889, %v1889
  %v2343 = vmul.f32 %v1890, %v1890
  %v2344 = vmul.f32 %v1891, %v1891
  %v2345 = vmul.f32 %v1892, %v1892
  %v2346 = vmul.f32 %v1893, %v1893
  %v2347 = vmul.f32 %v1894, %v1894
  %v2348 = vmul.f32 %v1895, %v1895
  %v2349 = vadd.f32 %v2285, %v2286
  %v2350 = vadd.f32 %v2349, %v2287
  %v2351 = vadd.f32 %v2350, %v2288
  %v2352 = vadd.f32 %v2351, %v2289
  %v2353 = vadd.f32 %v2352, %v2290
  %v2354 = vadd.f32 %v2353, %v2291
  %v2355 = vadd.f32 %v2354, %v2292
  %v2356 = vadd.f32 %v2355, %v2293
  %v2357 = vadd.f32 %v2356, %v2294
  %v2358 = vadd.f32 %v2357, %v2295
  %v2359 = vadd.f32 %v2358, %v2296
  %v2360 = vadd.f32 %v2359, %v2297
  %v2361 = vadd.f32 %v2360, %v2298
  %v2362 = vadd.f32 %v2361, %v2299
  %v2363 = vadd.f32 %v2362, %v2300
  %v2364 = vadd.f32 %v2363, %v2301
  %v2365 = vadd.f32 %v2364, %v2302
  %v2366 = vadd.f32 %v2365, %v2303
  %v2367 = vadd.f32 %v2366, %v2304
  %v2368 = vadd.f32 %v2367, %v2305
  %v2369 = vadd.f32 %v2368, %v2306
  %v2370 = vadd.f32 %v2369, %v2307
  %v2371 = vadd.f32 %v2370, %v2308
  %v2372 = vadd.f32 %v2371, %v2309
  %v2373 = vadd.f32 %v2372, %v2310
  %v2374 = vadd.f32 %v2373, %v2311
  %v2375 = vadd.f32 %v2374, %v2312
  %v2376 = vadd.f32 %v2375, %v2313
  %v2377 = vadd.f32 %v2376, %v2314
  %v2378 = vadd.f32 %v2377, %v2315
  %v2379 = vadd.f32 %v2378, %v2316
  %v2380 = vadd.f32 %v2379, %v2317
  %v2381 = vadd.f32 %v2380, %v2318
  %v2382 = vadd.f32 %v2381, %v2319
  %v2383 = vadd.f32 %v2382, %v2320
  %v2384 = vadd.f32 %v2383, %v2321
  %v2385 = vadd.f32 %v2384, %v2322
  %v2386 = vadd.f32 %v2385, %v2323
  %v2387 = vadd.f32 %v2386, %v2324
  %v2388 = vadd.f32 %v2387, %v2325
  %v2389 = vadd.f32 %v2388, %v2326
  %v2390 = vadd.f32 %v2389, %v2327
  %v2391 = vadd.f32 %v2390, %v2328
  %v2392 = vadd.f32 %v2391, %v2329
  %v2393 = vadd.f32 %v2392, %v2330
  %v2394 = vadd.f32 %v2393, %v2331
  %v2395 = vadd.f32 %v2394, %v2332
  %v2396 = vadd.f32 %v2395, %v2333
  %v2397 = vadd.f32 %v2396, %v2334
  %v2398 = vadd.f32 %v2397, %v2335
  %v2399 = vadd.f32 %v2398, %v2336
  %v2400 = vadd.f32 %v2399, %v2337
  %v2401 = vadd.f32 %v2400, %v2338
  %v2402 = vadd.f32 %v2401, %v2339
  %v2403 = vadd.f32 %v2402, %v2340
  %v2404 = vadd.f32 %v2403, %v2341
  %v2405 = vadd.f32 %v2404, %v2342
  %v2406 = vadd.f32 %v2405, %v2343
  %v2407 = vadd.f32 %v2406, %v2344
  %v2408 = vadd.f32 %v2407, %v2345
  %v2409 = vadd.f32 %v2408, %v2346
  %v2410 = vadd.f32 %v2409, %v2347
  %v2411 = vadd.f32 %v2410, %v2348
  %v2412 = vrot.slane %v2411, 4
  %v2413 = vadd.f32 %v2411, %v2412
  %v2414 = vrot.slane %v2413, 2
  %v2415 = vadd.f32 %v2413, %v2414
  %v2416 = vrot.slane %v2415, 1
  %v2417 = vadd.f32 %v2415, %v2416
  %v2418 = vsel %vm542, %v2284, %v2417
  %2419 = vst [vmem:[%s4] sm:$0x3] %v2418
  // Predicated region
  $region14: #{perceptual_loss.2} parent=0 // pred_check
    _
  $region15: #{perceptual_loss.2} parent=0 // pred_check_branch
    %2421 = sbr.rel (0) target = $region17
  $region16: #{perceptual_loss.2} parent=0 // pred_region
    _
  $region17: #{perceptual_loss.2} parent=0 // pred_fallthru
    _
  // Predicated region
  $region18: #{perceptual_loss.2} parent=0 // pred_check
    _
  $region19: #{perceptual_loss.2} parent=0 // pred_check_branch
    %2423 = sbr.rel (0) target = $region21
  $region20: #{perceptual_loss.2} parent=0 // pred_region
    _
  $region21: #{perceptual_loss.2} parent=0 // pred_fallthru
    _
  // Predicated region
  $region22: #{perceptual_loss.2} parent=0 // pred_check
    _
  $region23: #{perceptual_loss.2} parent=0 // pred_check_branch
    %2425 = sbr.rel (0) target = $region25
  $region24: #{perceptual_loss.2} parent=0 // pred_region
    _
  $region25: #{perceptual_loss.2} parent=0 // pred_fallthru
    _
  // Predicated region
  $region26: #{perceptual_loss.2} parent=0 // pred_check
    _
  $region27: #{perceptual_loss.2} parent=0 // pred_check_branch
    %2427 = sbr.rel (0) target = $region29
  $region28: #{perceptual_loss.2} parent=0 // pred_region
    _
  $region29: #{perceptual_loss.2} parent=0 // pred_fallthru
    _

</llo_original>
